<compile_context>
chip_gen: v5e
topology: v5e:2x2
jax: 0.10.0
libtpu: 0.0.40
codegen_flags: <defaults>
</compile_context>

<pallas_src>
import jax
import jax.numpy as jnp
from jax.experimental import pallas as pl
from jax.experimental.pallas import tpu as pltpu


def _round_up(v, m):
    return ((v + m - 1) // m) * m


def _braycurtis_kernel(x_ref, yt_ref, o_ref, num_acc, smax_acc):
    # x_ref    : (tn, td)  tile of x rows   (D chunk in lanes)
    # yt_ref   : (td, tm)  tile of y^T      (D chunk in sublanes, M in lanes)
    # o_ref    : (tn, tm)  output tile
    # num_acc  : (tn, tm)  f32 scratch, sum_d |x - y|        (persists over k)
    # smax_acc : (tn, tm)  f32 scratch, sum_d max(|x|, |y|)  (persists over k)
    k = pl.program_id(2)

    @pl.when(k == 0)
    def _init():
        num_acc[...] = jnp.zeros_like(num_acc)
        smax_acc[...] = jnp.zeros_like(smax_acc)

    # One small XLU transpose per grid step puts the D chunk in sublanes for x,
    # matching y^T.  (tn, td) -> (td, tn).
    xt = jnp.transpose(x_ref[...].astype(jnp.float32))    # (td, tn)
    yt = yt_ref[...].astype(jnp.float32)                   # (td, tm)
    ay = jnp.abs(yt)                                        # hoisted: shared by all rows

    td, tn = xt.shape
    tm = yt.shape[1]

    # Static unroll over the tn output rows (tn is small: 8-16).  Each row is
    # a (td, 1) column lane-broadcast once against the (td, tm) y^T tile; the
    # D reduction (sublanes) is cross-vreg VPU adds with a small XLU tail.
    # Per-row results are batched so the accumulator update is one dense
    # (tn, tm) '+=' per step (no masked single-sublane RMWs).
    num_rows = []
    max_rows = []
    for i in range(tn):
        xcol = xt[:, i:i + 1]                               # (td, 1)
        xb = jnp.broadcast_to(xcol, (td, tm))               # hoisted broadcast
        axb = jnp.broadcast_to(jnp.abs(xcol), (td, tm))     # hoisted |x| broadcast
        num_rows.append(jnp.sum(jnp.abs(xb - yt), axis=0, keepdims=True))
        max_rows.append(jnp.sum(jnp.maximum(axb, ay), axis=0, keepdims=True))

    num_acc[...] += jnp.concatenate(num_rows, axis=0)       # (tn, tm) dense store
    smax_acc[...] += jnp.concatenate(max_rows, axis=0)      # (tn, tm) dense store

    @pl.when(k == pl.num_programs(2) - 1)
    def _finalize():
        num = num_acc[...]
        # |x+y| = 2*max(|x|,|y|) - |x-y|  =>  den = 2*smax - num.
        # Guard against tiny negative cancellation when x ~= -y.
        den = jnp.maximum(2.0 * smax_acc[...] - num, 0.0) + jnp.float32(1e-8)
        # exact reciprocal: keeps the 1e-5 tolerance.
        o_ref[...] = (1.0 - num * pl.reciprocal(den, approx=False)).astype(o_ref.dtype)


def braycurtis_kernel(x, y, *, tn=16, tm=512, td=512):
    """Pairwise Bray-Curtis similarity.  x: (N, D), y: (M, D) -> (N, M)."""
    N, D = x.shape
    M, Dy = y.shape
    assert D == Dy, "feature dims must match"

    # Clamp tiles to the (aligned) problem size: tn on sublane (8) granularity,
    # tm / td on lane (128) granularity.
    tn = min(tn, _round_up(N, 8))
    tm = min(tm, _round_up(M, 128))
    td = min(td, _round_up(D, 128))

    Np = _round_up(N, tn)
    Mp = _round_up(M, tm)
    Dp = _round_up(D, td)

    # Pad / transpose in the ORIGINAL dtype (no wrapper upcast); the kernel
    # upcasts tiles to f32 in VMEM.  Zero padding is exact for this formula:
    # padded D entries add 0 to both sums; padded rows/cols are sliced off.
    x_p = x if (Np == N and Dp == D) else jnp.pad(x, ((0, Np - N), (0, Dp - D)))
    yt = y.T                                                  # (D, M)
    yt_p = yt if (Dp == D and Mp == M) else jnp.pad(yt, ((0, Dp - D), (0, Mp - M)))

    grid = (Np // tn, Mp // tm, Dp // td)

    out = pl.pallas_call(
        _braycurtis_kernel,
        out_shape=jax.ShapeDtypeStruct((Np, Mp), jnp.float32),
        grid_spec=pltpu.PrefetchScalarGridSpec(
            num_scalar_prefetch=0,
            grid=grid,
            in_specs=[
                pl.BlockSpec((tn, td), lambda i, j, k: (i, k)),   # x rows tile
                pl.BlockSpec((td, tm), lambda i, j, k: (k, j)),   # y^T tile
            ],
            out_specs=pl.BlockSpec((tn, tm), lambda i, j, k: (i, j)),
            scratch_shapes=[
                pltpu.VMEM((tn, tm), jnp.float32),   # num accumulator
                pltpu.VMEM((tn, tm), jnp.float32),   # sum-of-max accumulator
            ],
        ),
        compiler_params=pltpu.CompilerParams(
            dimension_semantics=("parallel", "parallel", "arbitrary"),
        ),
        cost_estimate=pl.CostEstimate(
            flops=5 * Np * Mp * Dp,
            transcendentals=Np * Mp,
            bytes_accessed=(x.dtype.itemsize * Np * Dp * (Mp // tm)
                            + y.dtype.itemsize * Mp * Dp * (Np // tn)
                            + 4 * Np * Mp),
        ),
    )(x_p, yt_p)

    return out[:N, :M]


def braycurtis_ref(x, y):
    xd = x[:, None, :].astype(jnp.float32)
    yd = y[None, :, :].astype(jnp.float32)
    num = jnp.sum(jnp.abs(xd - yd), axis=2)
    den = jnp.sum(jnp.abs(xd + yd), axis=2) + 1e-8
    return 1.0 - num / den


if __name__ == "__main__":
    key = jax.random.PRNGKey(0)
    kx, ky = jax.random.split(key)

    # Small, deliberately non-tile-multiple shapes: exercises N/M/D padding and
    # a multi-step D accumulation (Dp=384 -> 3 k-steps at td=128).  Small
    # explicit tiles keep compile time low; production calls use the bigger
    # defaults (tn=16, tm=512, td=512).
    N, M, D = 30, 200, 300
    x = jax.random.uniform(kx, (N, D), dtype=jnp.float32, minval=-1.0, maxval=1.0)
    y = jax.random.uniform(ky, (M, D), dtype=jnp.float32, minval=-1.0, maxval=1.0)

    out = braycurtis_kernel(x, y, tn=8, tm=128, td=128)
    out = jax.block_until_ready(out)

    ref = braycurtis_ref(x, y)
    assert out.shape == (N, M)
    assert jnp.allclose(out, ref, atol=1e-5, rtol=1e-5), "mismatch vs reference"

    print("KERNEL_OK")
</pallas_src>

<mosaic_0001>
module attributes {stable_mosaic.version = 11 : i64} {
  func.func @_braycurtis_kernel(%arg0: i32, %arg1: i32, %arg2: i32, %arg3: memref<8x128xf32, #tpu.memory_space<vmem>>, %arg4: memref<128x128xf32, #tpu.memory_space<vmem>>, %arg5: memref<8x128xf32, #tpu.memory_space<vmem>>, %arg6: memref<8x128xf32, #tpu.memory_space<vmem>>, %arg7: memref<8x128xf32, #tpu.memory_space<vmem>>) attributes {dimension_semantics = [#tpu.dimension_semantics<parallel>, #tpu.dimension_semantics<parallel>, #tpu.dimension_semantics<arbitrary>], iteration_bounds = array<i64: 4, 2, 3>, scalar_prefetch = 0 : i64, scratch_operands = 2 : i64, tpu.core_type = #tpu.core_type<tc>, window_params = [{transform_indices = @transform_0, window_bounds = array<i64: 8, 128>}, {transform_indices = @transform_1, window_bounds = array<i64: 128, 128>}, {transform_indices = @transform_2, window_bounds = array<i64: 8, 128>}]} {
    %c0_i32 = arith.constant 0 : i32
    %0 = arith.cmpi eq, %arg2, %c0_i32 : i32
    %1 = arith.extui %0 : i1 to i32
    %c0_i32_0 = arith.constant 0 : i32
    %2 = arith.cmpi ne, %1, %c0_i32_0 : i32
    scf.if %2 {
      %cst_28 = arith.constant 0.000000e+00 : f32
      %122 = vector.broadcast %cst_28 : f32 to vector<8x128xf32>
      %c0_29 = arith.constant 0 : index
      %c0_30 = arith.constant 0 : index
      %123 = vector.load %arg6[%c0_29, %c0_30] : memref<8x128xf32, #tpu.memory_space<vmem>>, vector<8x128xf32>
      tpu.vector_store %arg6[%c0_29, %c0_30], %122 {strides = array<i32>} : memref<8x128xf32, #tpu.memory_space<vmem>>, vector<8x128xf32>,
      %cst_31 = arith.constant 0.000000e+00 : f32
      %124 = vector.broadcast %cst_31 : f32 to vector<8x128xf32>
      %c0_32 = arith.constant 0 : index
      %c0_33 = arith.constant 0 : index
      %125 = vector.load %arg7[%c0_32, %c0_33] : memref<8x128xf32, #tpu.memory_space<vmem>>, vector<8x128xf32>
      tpu.vector_store %arg7[%c0_32, %c0_33], %124 {strides = array<i32>} : memref<8x128xf32, #tpu.memory_space<vmem>>, vector<8x128xf32>,
    } else {
    }
    %c0 = arith.constant 0 : index
    %c0_1 = arith.constant 0 : index
    %3 = vector.load %arg3[%c0, %c0_1] : memref<8x128xf32, #tpu.memory_space<vmem>>, vector<8x128xf32>
    %4 = tpu.transpose %3, [1, 0] : vector<8x128xf32> -> vector<128x8xf32>
    %c0_2 = arith.constant 0 : index
    %c0_3 = arith.constant 0 : index
    %5 = vector.load %arg4[%c0_2, %c0_3] : memref<128x128xf32, #tpu.memory_space<vmem>>, vector<128x128xf32>
    %6 = math.absf %5 : vector<128x128xf32>
    %7 = vector.extract_strided_slice %4 {offsets = [0, 0], sizes = [128, 1], strides = [1, 1]} : vector<128x8xf32> to vector<128x1xf32>
    %8 = vector.shape_cast %7 : vector<128x1xf32> to vector<128x1xf32>
    %9 = vector.broadcast %8 : vector<128x1xf32> to vector<128x128xf32>
    %10 = math.absf %7 : vector<128x1xf32>
    %11 = vector.shape_cast %10 : vector<128x1xf32> to vector<128x1xf32>
    %12 = vector.broadcast %11 : vector<128x1xf32> to vector<128x128xf32>
    %13 = arith.subf %9, %5 : vector<128x128xf32>
    %14 = math.absf %13 : vector<128x128xf32>
    %cst = arith.constant dense<0.000000e+00> : vector<128xf32>
    %15 = vector.multi_reduction <add>, %14, %cst [0] : vector<128x128xf32> to vector<128xf32>
    %16 = vector.shape_cast %15 : vector<128xf32> to vector<1x128xf32>
    %17 = arith.maximumf %12, %6 : vector<128x128xf32>
    %cst_4 = arith.constant dense<0.000000e+00> : vector<128xf32>
    %18 = vector.multi_reduction <add>, %17, %cst_4 [0] : vector<128x128xf32> to vector<128xf32>
    %19 = vector.shape_cast %18 : vector<128xf32> to vector<1x128xf32>
    %20 = vector.extract_strided_slice %4 {offsets = [0, 1], sizes = [128, 1], strides = [1, 1]} : vector<128x8xf32> to vector<128x1xf32>
    %21 = vector.shape_cast %20 : vector<128x1xf32> to vector<128x1xf32>
    %22 = vector.broadcast %21 : vector<128x1xf32> to vector<128x128xf32>
    %23 = math.absf %20 : vector<128x1xf32>
    %24 = vector.shape_cast %23 : vector<128x1xf32> to vector<128x1xf32>
    %25 = vector.broadcast %24 : vector<128x1xf32> to vector<128x128xf32>
    %26 = arith.subf %22, %5 : vector<128x128xf32>
    %27 = math.absf %26 : vector<128x128xf32>
    %cst_5 = arith.constant dense<0.000000e+00> : vector<128xf32>
    %28 = vector.multi_reduction <add>, %27, %cst_5 [0] : vector<128x128xf32> to vector<128xf32>
    %29 = vector.shape_cast %28 : vector<128xf32> to vector<1x128xf32>
    %30 = arith.maximumf %25, %6 : vector<128x128xf32>
    %cst_6 = arith.constant dense<0.000000e+00> : vector<128xf32>
    %31 = vector.multi_reduction <add>, %30, %cst_6 [0] : vector<128x128xf32> to vector<128xf32>
    %32 = vector.shape_cast %31 : vector<128xf32> to vector<1x128xf32>
    %33 = vector.extract_strided_slice %4 {offsets = [0, 2], sizes = [128, 1], strides = [1, 1]} : vector<128x8xf32> to vector<128x1xf32>
    %34 = vector.shape_cast %33 : vector<128x1xf32> to vector<128x1xf32>
    %35 = vector.broadcast %34 : vector<128x1xf32> to vector<128x128xf32>
    %36 = math.absf %33 : vector<128x1xf32>
    %37 = vector.shape_cast %36 : vector<128x1xf32> to vector<128x1xf32>
    %38 = vector.broadcast %37 : vector<128x1xf32> to vector<128x128xf32>
    %39 = arith.subf %35, %5 : vector<128x128xf32>
    %40 = math.absf %39 : vector<128x128xf32>
    %cst_7 = arith.constant dense<0.000000e+00> : vector<128xf32>
    %41 = vector.multi_reduction <add>, %40, %cst_7 [0] : vector<128x128xf32> to vector<128xf32>
    %42 = vector.shape_cast %41 : vector<128xf32> to vector<1x128xf32>
    %43 = arith.maximumf %38, %6 : vector<128x128xf32>
    %cst_8 = arith.constant dense<0.000000e+00> : vector<128xf32>
    %44 = vector.multi_reduction <add>, %43, %cst_8 [0] : vector<128x128xf32> to vector<128xf32>
    %45 = vector.shape_cast %44 : vector<128xf32> to vector<1x128xf32>
    %46 = vector.extract_strided_slice %4 {offsets = [0, 3], sizes = [128, 1], strides = [1, 1]} : vector<128x8xf32> to vector<128x1xf32>
    %47 = vector.shape_cast %46 : vector<128x1xf32> to vector<128x1xf32>
    %48 = vector.broadcast %47 : vector<128x1xf32> to vector<128x128xf32>
    %49 = math.absf %46 : vector<128x1xf32>
    %50 = vector.shape_cast %49 : vector<128x1xf32> to vector<128x1xf32>
    %51 = vector.broadcast %50 : vector<128x1xf32> to vector<128x128xf32>
    %52 = arith.subf %48, %5 : vector<128x128xf32>
    %53 = math.absf %52 : vector<128x128xf32>
    %cst_9 = arith.constant dense<0.000000e+00> : vector<128xf32>
    %54 = vector.multi_reduction <add>, %53, %cst_9 [0] : vector<128x128xf32> to vector<128xf32>
    %55 = vector.shape_cast %54 : vector<128xf32> to vector<1x128xf32>
    %56 = arith.maximumf %51, %6 : vector<128x128xf32>
    %cst_10 = arith.constant dense<0.000000e+00> : vector<128xf32>
    %57 = vector.multi_reduction <add>, %56, %cst_10 [0] : vector<128x128xf32> to vector<128xf32>
    %58 = vector.shape_cast %57 : vector<128xf32> to vector<1x128xf32>
    %59 = vector.extract_strided_slice %4 {offsets = [0, 4], sizes = [128, 1], strides = [1, 1]} : vector<128x8xf32> to vector<128x1xf32>
    %60 = vector.shape_cast %59 : vector<128x1xf32> to vector<128x1xf32>
    %61 = vector.broadcast %60 : vector<128x1xf32> to vector<128x128xf32>
    %62 = math.absf %59 : vector<128x1xf32>
    %63 = vector.shape_cast %62 : vector<128x1xf32> to vector<128x1xf32>
    %64 = vector.broadcast %63 : vector<128x1xf32> to vector<128x128xf32>
    %65 = arith.subf %61, %5 : vector<128x128xf32>
    %66 = math.absf %65 : vector<128x128xf32>
    %cst_11 = arith.constant dense<0.000000e+00> : vector<128xf32>
    %67 = vector.multi_reduction <add>, %66, %cst_11 [0] : vector<128x128xf32> to vector<128xf32>
    %68 = vector.shape_cast %67 : vector<128xf32> to vector<1x128xf32>
    %69 = arith.maximumf %64, %6 : vector<128x128xf32>
    %cst_12 = arith.constant dense<0.000000e+00> : vector<128xf32>
    %70 = vector.multi_reduction <add>, %69, %cst_12 [0] : vector<128x128xf32> to vector<128xf32>
    %71 = vector.shape_cast %70 : vector<128xf32> to vector<1x128xf32>
    %72 = vector.extract_strided_slice %4 {offsets = [0, 5], sizes = [128, 1], strides = [1, 1]} : vector<128x8xf32> to vector<128x1xf32>
    %73 = vector.shape_cast %72 : vector<128x1xf32> to vector<128x1xf32>
    %74 = vector.broadcast %73 : vector<128x1xf32> to vector<128x128xf32>
    %75 = math.absf %72 : vector<128x1xf32>
    %76 = vector.shape_cast %75 : vector<128x1xf32> to vector<128x1xf32>
    %77 = vector.broadcast %76 : vector<128x1xf32> to vector<128x128xf32>
    %78 = arith.subf %74, %5 : vector<128x128xf32>
    %79 = math.absf %78 : vector<128x128xf32>
    %cst_13 = arith.constant dense<0.000000e+00> : vector<128xf32>
    %80 = vector.multi_reduction <add>, %79, %cst_13 [0] : vector<128x128xf32> to vector<128xf32>
    %81 = vector.shape_cast %80 : vector<128xf32> to vector<1x128xf32>
    %82 = arith.maximumf %77, %6 : vector<128x128xf32>
    %cst_14 = arith.constant dense<0.000000e+00> : vector<128xf32>
    %83 = vector.multi_reduction <add>, %82, %cst_14 [0] : vector<128x128xf32> to vector<128xf32>
    %84 = vector.shape_cast %83 : vector<128xf32> to vector<1x128xf32>
    %85 = vector.extract_strided_slice %4 {offsets = [0, 6], sizes = [128, 1], strides = [1, 1]} : vector<128x8xf32> to vector<128x1xf32>
    %86 = vector.shape_cast %85 : vector<128x1xf32> to vector<128x1xf32>
    %87 = vector.broadcast %86 : vector<128x1xf32> to vector<128x128xf32>
    %88 = math.absf %85 : vector<128x1xf32>
    %89 = vector.shape_cast %88 : vector<128x1xf32> to vector<128x1xf32>
    %90 = vector.broadcast %89 : vector<128x1xf32> to vector<128x128xf32>
    %91 = arith.subf %87, %5 : vector<128x128xf32>
    %92 = math.absf %91 : vector<128x128xf32>
    %cst_15 = arith.constant dense<0.000000e+00> : vector<128xf32>
    %93 = vector.multi_reduction <add>, %92, %cst_15 [0] : vector<128x128xf32> to vector<128xf32>
    %94 = vector.shape_cast %93 : vector<128xf32> to vector<1x128xf32>
    %95 = arith.maximumf %90, %6 : vector<128x128xf32>
    %cst_16 = arith.constant dense<0.000000e+00> : vector<128xf32>
    %96 = vector.multi_reduction <add>, %95, %cst_16 [0] : vector<128x128xf32> to vector<128xf32>
    %97 = vector.shape_cast %96 : vector<128xf32> to vector<1x128xf32>
    %98 = vector.extract_strided_slice %4 {offsets = [0, 7], sizes = [128, 1], strides = [1, 1]} : vector<128x8xf32> to vector<128x1xf32>
    %99 = vector.shape_cast %98 : vector<128x1xf32> to vector<128x1xf32>
    %100 = vector.broadcast %99 : vector<128x1xf32> to vector<128x128xf32>
    %101 = math.absf %98 : vector<128x1xf32>
    %102 = vector.shape_cast %101 : vector<128x1xf32> to vector<128x1xf32>
    %103 = vector.broadcast %102 : vector<128x1xf32> to vector<128x128xf32>
    %104 = arith.subf %100, %5 : vector<128x128xf32>
    %105 = math.absf %104 : vector<128x128xf32>
    %cst_17 = arith.constant dense<0.000000e+00> : vector<128xf32>
    %106 = vector.multi_reduction <add>, %105, %cst_17 [0] : vector<128x128xf32> to vector<128xf32>
    %107 = vector.shape_cast %106 : vector<128xf32> to vector<1x128xf32>
    %108 = arith.maximumf %103, %6 : vector<128x128xf32>
    %cst_18 = arith.constant dense<0.000000e+00> : vector<128xf32>
    %109 = vector.multi_reduction <add>, %108, %cst_18 [0] : vector<128x128xf32> to vector<128xf32>
    %110 = vector.shape_cast %109 : vector<128xf32> to vector<1x128xf32>
    %c0_19 = arith.constant 0 : index
    %c0_20 = arith.constant 0 : index
    %111 = vector.load %arg6[%c0_19, %c0_20] : memref<8x128xf32, #tpu.memory_space<vmem>>, vector<8x128xf32>
    %112 = tpu.concatenate %16, %29, %42, %55, %68, %81, %94, %107 in 0 : vector<1x128xf32>, vector<1x128xf32>, vector<1x128xf32>, vector<1x128xf32>, vector<1x128xf32>, vector<1x128xf32>, vector<1x128xf32>, vector<1x128xf32> -> vector<8x128xf32>
    %113 = arith.addf %111, %112 : vector<8x128xf32>
    %c0_21 = arith.constant 0 : index
    %c0_22 = arith.constant 0 : index
    %114 = vector.load %arg6[%c0_21, %c0_22] : memref<8x128xf32, #tpu.memory_space<vmem>>, vector<8x128xf32>
    tpu.vector_store %arg6[%c0_21, %c0_22], %113 {strides = array<i32>} : memref<8x128xf32, #tpu.memory_space<vmem>>, vector<8x128xf32>,
    %c0_23 = arith.constant 0 : index
    %c0_24 = arith.constant 0 : index
    %115 = vector.load %arg7[%c0_23, %c0_24] : memref<8x128xf32, #tpu.memory_space<vmem>>, vector<8x128xf32>
    %116 = tpu.concatenate %19, %32, %45, %58, %71, %84, %97, %110 in 0 : vector<1x128xf32>, vector<1x128xf32>, vector<1x128xf32>, vector<1x128xf32>, vector<1x128xf32>, vector<1x128xf32>, vector<1x128xf32>, vector<1x128xf32> -> vector<8x128xf32>
    %117 = arith.addf %115, %116 : vector<8x128xf32>
    %c0_25 = arith.constant 0 : index
    %c0_26 = arith.constant 0 : index
    %118 = vector.load %arg7[%c0_25, %c0_26] : memref<8x128xf32, #tpu.memory_space<vmem>>, vector<8x128xf32>
    tpu.vector_store %arg7[%c0_25, %c0_26], %117 {strides = array<i32>} : memref<8x128xf32, #tpu.memory_space<vmem>>, vector<8x128xf32>,
    %c2_i32 = arith.constant 2 : i32
    %119 = arith.cmpi eq, %arg2, %c2_i32 : i32
    %120 = arith.extui %119 : i1 to i32
    %c0_i32_27 = arith.constant 0 : i32
    %121 = arith.cmpi ne, %120, %c0_i32_27 : i32
    scf.if %121 {
      %c0_28 = arith.constant 0 : index
      %c0_29 = arith.constant 0 : index
      %122 = vector.load %arg6[%c0_28, %c0_29] : memref<8x128xf32, #tpu.memory_space<vmem>>, vector<8x128xf32>
      %c0_30 = arith.constant 0 : index
      %c0_31 = arith.constant 0 : index
      %123 = vector.load %arg7[%c0_30, %c0_31] : memref<8x128xf32, #tpu.memory_space<vmem>>, vector<8x128xf32>
      %cst_32 = arith.constant 2.000000e+00 : f32
      %124 = vector.broadcast %cst_32 : f32 to vector<8x128xf32>
      %125 = arith.mulf %124, %123 : vector<8x128xf32>
      %126 = arith.subf %125, %122 : vector<8x128xf32>
      %cst_33 = arith.constant 0.000000e+00 : f32
      %127 = vector.broadcast %cst_33 : f32 to vector<8x128xf32>
      %128 = arith.maximumf %126, %127 : vector<8x128xf32>
      %cst_34 = arith.constant 9.99999993E-9 : f32
      %129 = vector.broadcast %cst_34 : f32 to vector<8x128xf32>
      %130 = arith.addf %128, %129 : vector<8x128xf32>
      %131 = tpu.reciprocal %130 : vector<8x128xf32> -> vector<8x128xf32>
      %132 = arith.mulf %122, %131 : vector<8x128xf32>
      %cst_35 = arith.constant 1.000000e+00 : f32
      %133 = vector.broadcast %cst_35 : f32 to vector<8x128xf32>
      %134 = arith.subf %133, %132 : vector<8x128xf32>
      %c0_36 = arith.constant 0 : index
      %c0_37 = arith.constant 0 : index
      %135 = vector.load %arg5[%c0_36, %c0_37] : memref<8x128xf32, #tpu.memory_space<vmem>>, vector<8x128xf32>
      tpu.vector_store %arg5[%c0_36, %c0_37], %134 {strides = array<i32>} : memref<8x128xf32, #tpu.memory_space<vmem>>, vector<8x128xf32>,
    } else {
    }
    return
  }
  func.func @transform_0(%arg0: i32, %arg1: i32, %arg2: i32) -> (i32, i32) {
    %c0_i32 = arith.constant 0 : i32
    return %arg0, %arg2 : i32, i32
  }
  func.func @transform_1(%arg0: i32, %arg1: i32, %arg2: i32) -> (i32, i32) {
    %c0_i32 = arith.constant 0 : i32
    return %arg2, %arg1 : i32, i32
  }
  func.func @transform_2(%arg0: i32, %arg1: i32, %arg2: i32) -> (i32, i32) {
    %c0_i32 = arith.constant 0 : i32
    return %arg0, %arg1 : i32, i32
  }
}

</mosaic_0001>

<llo_original>
// kernel: tpu_custom_call.1
$region0: #{tpu_custom_call.1}
  #allocation0 [shape = 'u32[]', space=smem, size = 0x4, offset = 0x4, fixed_abs, tag = 'smem constant byte address 0x4 - core index']
  #allocation1 [shape = 'u32[72,128]{1,0:T(1,128)}', space=vmem, size = 0x9000, scoped, tag = 'internal scratch']
  #allocation2 [shape = 'f32[8,128]{1,0:T(8,128)}', space=vmem, size = 0x1000, scoped, tag = 'scratch operand']
  #allocation3 [shape = 'f32[8,128]{1,0:T(8,128)}', space=vmem, size = 0x1000, scoped, tag = 'scratch operand']
  %s0 = inlined_call_operand.hbm [shape: f32[32,384], index: 0, kind: input, shape index: {}]
  %s1 = inlined_call_operand.hbm [shape: f32[384,256], index: 1, kind: input, shape index: {}]
  %s2 = inlined_call_operand.hbm [shape: f32[32,256], index: 2, kind: output, shape index: {}]
  %s3 = sld [smem:[#allocation0]]
  $region57: #{tpu_custom_call.1} parent=0
    _
  %s5 = ssub.s32 1, %s3
  %s6 = scalar_select 0, %s5, %s3
  $region1: #{tpu_custom_call.1} parent=0
    #allocation4 [shape = 'u8[8192]{0}', space=vmem, size = 0x2000, scoped, tag = 'input window, operand 0']
    #allocation5 [shape = 's32[2]{0}', space=sflag, size = 0x8, scoped, tag = 'scoped memory for tpu_custom_call.1']
    #allocation6 [shape = 's32[2]{0}', space=sflag, size = 0x8, scoped, tag = 'scoped memory for tpu_custom_call.1']
    #allocation7 [shape = 'u8[131072]{0}', space=vmem, size = 0x20000, scoped, tag = 'input window, operand 1']
    #allocation8 [shape = 's32[2]{0}', space=sflag, size = 0x8, scoped, tag = 'scoped memory for tpu_custom_call.1']
    #allocation9 [shape = 'u8[8192]{0}', space=vmem, size = 0x2000, scoped, tag = 'output window, operand 0']
    %7 = vsyncpa [#allocation5], 0
    %s8 = scalar_lea.sflag [#allocation5], 1
    %9 = vsyncpa %s8, 0
    %10 = vsyncpa [#allocation8], 0
    %s11 = scalar_lea.sflag [#allocation8], 1
    %12 = vsyncpa %s11, 0
    %13 = vsyncpa [#allocation6], 0
    %s14 = scalar_lea.sflag [#allocation6], 1
    %15 = vsyncpa %s14, 0
    loop: start=0, step=1, limit=26
    $region2: #{tpu_custom_call.1} parent=1 // loop_pre_header
      _
    $region3: #{tpu_custom_call.1} parent=1 // loop_header
      %s17 = sphi 0, %s21
      %p18 = scmp.ge.s32.totalorder %s17, 26
      %s24 = sphi 0, %s43
      %s25 = sphi 0, %s39
      %s26 = sphi 0, %s35
      %s27 = sphi 0, %s24
      %s28 = sphi 0, %s25
      %s29 = sphi 0, %s26
      %s30 = sphi 0, %s27
      %s31 = sphi 0, %s28
      %s32 = sphi 0, %s29
      %s48 = sphi 0, %s50
      %s51 = sphi 0, %s48
      %s52 = sphi 0, %s51
      %s68 = sphi 0, %s52
      %s76 = sphi 0, %s78
      %s79 = sphi 0, %s76
      %s80 = sphi 0, %s79
      %s96 = sphi 0, %s80
      %s104 = sphi 0, %s106
      %s107 = sphi 0, %s104
      %s108 = sphi 0, %s107
      %s124 = sphi 0, %s108
    $region4: #{tpu_custom_call.1} parent=1 // loop_header_branch
      %20 = sbr.rel (%p18) target = $region8
    $region5: #{tpu_custom_call.1} parent=1 // loop_body
      %s22 = ssub.s32 %s17, 1
      %s23 = ssub.s32 %s17, 2
      %s33 = sadd.s32 1, %s26
      %p34 = scmp.ge.s32.totalorder %s33, 3
      %s35 = scalar_select %p34, 0, %s33
      %s36 = sadd.s32 1, %s25
      %s37 = scalar_select %p34, %s36, %s25
      %p38 = scmp.ge.s32.totalorder %s37, 2
      %s39 = scalar_select %p38, 0, %s37
      %s40 = sadd.s32 1, %s24
      %s41 = scalar_select %p38, %s40, %s24
      %p42 = scmp.ge.s32.totalorder %s41, 4
      %s43 = scalar_select %p42, 0, %s41
      %s44 = ssub.s32 %s24, %s43
      %s45 = ssub.s32 %s26, %s35
      %s46 = sor.u32 %s44, %s45
      %p47 = scmp.eq.s32.totalorder %s46, 0
      %s49 = sadd.s32 %s48, 1
      %s50 = scalar_select %p47, %s48, %s49
      %p53 = pneg %p47
      %p54 = scmp.eq.s32.totalorder %s17, 23
      %p55 = por %p53, %p54
      %p56 = scmp.ne.s32.totalorder %s48, %s51
      %p57 = scmp.eq.s32.totalorder %s17, 0
      %p58 = por %p56, %p57
      %p59 = scmp.ne.s32.totalorder %s48, %s51
      %p60 = scmp.eq.s32.totalorder %s22, 23
      %p61 = por %p59, %p60
      %p62 = scmp.ne.s32.totalorder %s51, %s52
      %p63 = scmp.eq.s32.totalorder %s22, 0
      %p64 = por %p62, %p63
      %p65 = scmp.ne.s32.totalorder %s51, %s52
      %p66 = scmp.eq.s32.totalorder %s23, 23
      %p67 = por %p65, %p66
      %p69 = scmp.ne.s32.totalorder %s52, %s68
      %p70 = scmp.eq.s32.totalorder %s23, 0
      %p71 = por %p69, %p70
      %s72 = ssub.s32 %s26, %s35
      %s73 = ssub.s32 %s25, %s39
      %s74 = sor.u32 %s72, %s73
      %p75 = scmp.eq.s32.totalorder %s74, 0
      %s77 = sadd.s32 %s76, 1
      %s78 = scalar_select %p75, %s76, %s77
      %p81 = pneg %p75
      %p82 = scmp.eq.s32.totalorder %s17, 23
      %p83 = por %p81, %p82
      %p84 = scmp.ne.s32.totalorder %s76, %s79
      %p85 = scmp.eq.s32.totalorder %s17, 0
      %p86 = por %p84, %p85
      %p87 = scmp.ne.s32.totalorder %s76, %s79
      %p88 = scmp.eq.s32.totalorder %s22, 23
      %p89 = por %p87, %p88
      %p90 = scmp.ne.s32.totalorder %s79, %s80
      %p91 = scmp.eq.s32.totalorder %s22, 0
      %p92 = por %p90, %p91
      %p93 = scmp.ne.s32.totalorder %s79, %s80
      %p94 = scmp.eq.s32.totalorder %s23, 23
      %p95 = por %p93, %p94
      %p97 = scmp.ne.s32.totalorder %s80, %s96
      %p98 = scmp.eq.s32.totalorder %s23, 0
      %p99 = por %p97, %p98
      %s100 = ssub.s32 %s24, %s43
      %s101 = ssub.s32 %s25, %s39
      %s102 = sor.u32 %s100, %s101
      %p103 = scmp.eq.s32.totalorder %s102, 0
      %s105 = sadd.s32 %s104, 1
      %s106 = scalar_select %p103, %s104, %s105
      %p109 = pneg %p103
      %p110 = scmp.eq.s32.totalorder %s17, 23
      %p111 = por %p109, %p110
      %p112 = scmp.ne.s32.totalorder %s104, %s107
      %p113 = scmp.eq.s32.totalorder %s17, 0
      %p114 = por %p112, %p113
      %p115 = scmp.ne.s32.totalorder %s104, %s107
      %p116 = scmp.eq.s32.totalorder %s22, 23
      %p117 = por %p115, %p116
      %p118 = scmp.ne.s32.totalorder %s107, %s108
      %p119 = scmp.eq.s32.totalorder %s22, 0
      %p120 = por %p118, %p119
      %p121 = scmp.ne.s32.totalorder %s107, %s108
      %p122 = scmp.eq.s32.totalorder %s23, 23
      %p123 = por %p121, %p122
      %p125 = scmp.ne.s32.totalorder %s108, %s124
      %p126 = scmp.eq.s32.totalorder %s23, 0
      %p127 = por %p125, %p126
      %p128 = scmp.le.s32.totalorder 1, %s17
      %p129 = scmp.lt.s32.totalorder %s17, 25
      %p130 = pnand %p128, %p129
      %p131 = pneg %p130
      // Predicated region
      $region9: #{tpu_custom_call.1} parent=5 // pred_check
        _
      $region10: #{tpu_custom_call.1} parent=5 // pred_check_branch
        %133 = sbr.rel (%p130) target = $region12
      $region11: #{tpu_custom_call.1} parent=5 // pred_region
        %s134 = ssub.s32 %s17, 1
      $region12: #{tpu_custom_call.1} parent=5 // pred_fallthru
        _
      %p135 = scmp.lt.s32.totalorder %s17, 24
      // Predicated region
      $region13: #{tpu_custom_call.1} parent=5 // pred_check
        %p136 = pneg %p135
      $region14: #{tpu_custom_call.1} parent=5 // pred_check_branch
        %138 = sbr.rel (%p136) target = $region16
      $region15: #{tpu_custom_call.1} parent=5 // pred_region
        // Predicated region
        $region17: #{tpu_custom_call.1} parent=15 // pred_check
          %p139 = pneg %p58
        $region18: #{tpu_custom_call.1} parent=15 // pred_check_branch
          %141 = sbr.rel (%p139) target = $region20
        $region19: #{tpu_custom_call.1} parent=15 // pred_region
          %s142 = sand.u32 %s48, 1
          %s143 = scalar_lea.sflag [#allocation5], %s142
          %s144 = sand.u32 %s48, 1
          %s145 = smul.addr %s144, 8
          %s146 = scalar_lea.vmem [#allocation4], %s145
          %148 = vsyncadd %s143, 0
          %s149 = smul.addr %s24, 3
          %s150 = sadd.s32 %s26, %s149
          %s151 = smul.addr %s150, 8
          %s152 = scalar_lea.hbm %s0, %s151
          %s154 = sshll.u32 %s152, 4
          %s155 = int_to_ptr.hbm [resolvable:$true] %s154
          %s156 = sshll.u32 %s146, 4
          %s157 = int_to_ptr.vmem [resolvable:$true] %s156
          %159 = dma.hbm_to_vmem [thread:$0]  %s155, 128, %s157, %s143
        $region20: #{tpu_custom_call.1} parent=15 // pred_fallthru
          _
        // Predicated region
        $region21: #{tpu_custom_call.1} parent=15 // pred_check
          %p160 = pneg %p86
        $region22: #{tpu_custom_call.1} parent=15 // pred_check_branch
          %162 = sbr.rel (%p160) target = $region24
        $region23: #{tpu_custom_call.1} parent=15 // pred_region
          %s163 = sand.u32 %s76, 1
          %s164 = scalar_lea.sflag [#allocation8], %s163
          %s165 = sand.u32 %s76, 1
          %s166 = smul.addr %s165, 128
          %s167 = scalar_lea.vmem [#allocation7], %s166
          %s168 = smul.u32 16, %s26
          %170 = vsyncadd %s164, 0
          %s171 = smul.addr %s168, 2
          %s172 = sadd.s32 %s25, %s171
          %s173 = smul.addr %s172, 8
          %s174 = scalar_lea.hbm %s1, %s173
          %s175 = sshll.u32 %s174, 4
          %s176 = int_to_ptr.hbm [resolvable:$true] %s175
          %s177 = sshll.u32 %s167, 4
          %s178 = int_to_ptr.vmem [resolvable:$true] %s177
          %183 = dma.hbm_to_vmem [thread:$0]  %s176, 2048, %s178, %s164, 256, 128, 8
        $region24: #{tpu_custom_call.1} parent=15 // pred_fallthru
          _
      $region16: #{tpu_custom_call.1} parent=5 // pred_fallthru
        _
      %p184 = scmp.le.s32.totalorder 1, %s17
      %p185 = scmp.lt.s32.totalorder %s17, 25
      %p186 = pnand %p184, %p185
      %p187 = pneg %p186
      // Predicated region
      $region25: #{tpu_custom_call.1} parent=5 // pred_check
        _
      $region26: #{tpu_custom_call.1} parent=5 // pred_check_branch
        %189 = sbr.rel (%p186) target = $region28
      $region27: #{tpu_custom_call.1} parent=5 // pred_region
        %s190 = ssub.s32 %s17, 1
        %s191 = sand.u32 %s51, 1
        %s192 = scalar_lea.sflag [#allocation5], %s191
        %s193 = sand.u32 %s51, 1
        %s194 = smul.addr %s193, 8
        %s195 = scalar_lea.vmem [#allocation4], %s194
        // Predicated region
        $region29: #{tpu_custom_call.1} parent=27 // pred_check
          %p196 = pneg %p64
        $region30: #{tpu_custom_call.1} parent=27 // pred_check_branch
          %198 = sbr.rel (%p196) target = $region32
        $region31: #{tpu_custom_call.1} parent=27 // pred_region
          %200 = dma.done %s192, 128
        $region32: #{tpu_custom_call.1} parent=27 // pred_fallthru
          _
        %s201 = sand.u32 %s79, 1
        %s202 = scalar_lea.sflag [#allocation8], %s201
        %s203 = sand.u32 %s79, 1
        %s204 = smul.addr %s203, 128
        %s205 = scalar_lea.vmem [#allocation7], %s204
        // Predicated region
        $region33: #{tpu_custom_call.1} parent=27 // pred_check
          %p206 = pneg %p92
        $region34: #{tpu_custom_call.1} parent=27 // pred_check_branch
          %208 = sbr.rel (%p206) target = $region36
        $region35: #{tpu_custom_call.1} parent=27 // pred_region
          %210 = dma.done %s202, 2048
        $region36: #{tpu_custom_call.1} parent=27 // pred_fallthru
          _
        %s211 = sand.u32 %s51, 1
        %s212 = scalar_lea.sflag [#allocation5], %s211
        %s213 = sand.u32 %s51, 1
        %s214 = smul.addr %s213, 8
        %s215 = scalar_lea.vmem [#allocation4], %s214
        %p216 = pneg %p64
        %p217 = pneg %p61
        %s218 = sand.u32 %s79, 1
        %s219 = scalar_lea.sflag [#allocation8], %s218
        %s220 = sand.u32 %s79, 1
        %s221 = smul.addr %s220, 128
        %s222 = scalar_lea.vmem [#allocation7], %s221
        %p223 = pneg %p92
        %p224 = pneg %p89
        %p225 = pneg %p120
        %p226 = pneg %p117
        %s227 = sand.u32 %s107, 1
        %s228 = scalar_lea.sflag [#allocation6], %s227
        %s229 = sand.u32 %s107, 1
        %s230 = smul.addr %s229, 8
        %s231 = scalar_lea.vmem [#allocation9], %s230
        %s232 = smul.u32 16, %s29
        %p233 = scmp.eq.s32.totalorder %s29, 0
        // Predicated region
        $region37: #{tpu_custom_call.1} parent=27 // pred_check
          %p234 = pneg %p233
        $region38: #{tpu_custom_call.1} parent=27 // pred_check_branch
          %236 = sbr.rel (%p234) target = $region40
        $region39: #{tpu_custom_call.1} parent=27 // pred_region
          %237 = vst [vmem:[#allocation2] sm:$0xff] 0.0
          %238 = vst [vmem:[#allocation3] sm:$0xff] 0.0
        $region40: #{tpu_custom_call.1} parent=27 // pred_fallthru
          _
        %v239 = vld [vmem:[%s195] sm:$0xff]
        %240 = vxpose.xlu0.b32.start [1/16] %v239, 128
        %241 = vxpose.xlu0.b32.cont [2/16] 0.0, 128
        %242 = vxpose.xlu0.b32.cont [3/16] 0.0, 128
        %243 = vxpose.xlu0.b32.cont [4/16] 0.0, 128
        %244 = vxpose.xlu0.b32.cont [5/16] 0.0, 128
        %245 = vxpose.xlu0.b32.cont [6/16] 0.0, 128
        %246 = vxpose.xlu0.b32.cont [7/16] 0.0, 128
        %247 = vxpose.xlu0.b32.cont [8/16] 0.0, 128
        %248 = vxpose.xlu0.b32.cont [9/16] 0.0, 128
        %249 = vxpose.xlu0.b32.cont [10/16] 0.0, 128
        %250 = vxpose.xlu0.b32.cont [11/16] 0.0, 128
        %251 = vxpose.xlu0.b32.cont [12/16] 0.0, 128
        %252 = vxpose.xlu0.b32.cont [13/16] 0.0, 128
        %253 = vxpose.xlu0.b32.cont [14/16] 0.0, 128
        %254 = vxpose.xlu0.b32.cont [15/16] 0.0, 128
        %255 = vxpose.xlu0.b32.end [16/16] 0.0, 128
        %v256 = vpop.trf.xlu0
        %v257 = vpop.trf.xlu0
        %v258 = vpop.trf.xlu0
        %v259 = vpop.trf.xlu0
        %v260 = vpop.trf.xlu0
        %v261 = vpop.trf.xlu0
        %v262 = vpop.trf.xlu0
        %v263 = vpop.trf.xlu0
        %v264 = vpop.trf.xlu0
        %v265 = vpop.trf.xlu0
        %v266 = vpop.trf.xlu0
        %v267 = vpop.trf.xlu0
        %v268 = vpop.trf.xlu0
        %v269 = vpop.trf.xlu0
        %v270 = vpop.trf.xlu0
        %v271 = vpop.trf.xlu0
        %v272 = vld [vmem:[%s205] sm:$0xff]
        %v273 = vld [vmem:[%s205 + $0x8] sm:$0xff]
        %v274 = vld [vmem:[%s205 + $0x10] sm:$0xff]
        %v275 = vld [vmem:[%s205 + $0x18] sm:$0xff]
        %v276 = vld [vmem:[%s205 + $0x20] sm:$0xff]
        %v277 = vld [vmem:[%s205 + $0x28] sm:$0xff]
        %v278 = vld [vmem:[%s205 + $0x30] sm:$0xff]
        %v279 = vld [vmem:[%s205 + $0x38] sm:$0xff]
        %v280 = vld [vmem:[%s205 + $0x40] sm:$0xff]
        %v281 = vld [vmem:[%s205 + $0x48] sm:$0xff]
        %v282 = vld [vmem:[%s205 + $0x50] sm:$0xff]
        %v283 = vld [vmem:[%s205 + $0x58] sm:$0xff]
        %v284 = vld [vmem:[%s205 + $0x60] sm:$0xff]
        %v285 = vld [vmem:[%s205 + $0x68] sm:$0xff]
        %v286 = vld [vmem:[%s205 + $0x70] sm:$0xff]
        %v287 = vld [vmem:[%s205 + $0x78] sm:$0xff]
        %v288 = vand.u32 2147483647, %v272
        %v289 = vand.u32 2147483647, %v273
        %v290 = vand.u32 2147483647, %v274
        %v291 = vand.u32 2147483647, %v275
        %v292 = vand.u32 2147483647, %v276
        %v293 = vand.u32 2147483647, %v277
        %v294 = vand.u32 2147483647, %v278
        %v295 = vand.u32 2147483647, %v279
        %v296 = vand.u32 2147483647, %v280
        %v297 = vand.u32 2147483647, %v281
        %v298 = vand.u32 2147483647, %v282
        %v299 = vand.u32 2147483647, %v283
        %v300 = vand.u32 2147483647, %v284
        %v301 = vand.u32 2147483647, %v285
        %v302 = vand.u32 2147483647, %v286
        %v303 = vand.u32 2147483647, %v287
        %305 = vset.pattern.permute.xlu0 0
        %306 = vperm.xlu0 %305, %v256
        %v307 = vpop.permute.xlu0 %306
        %310 = vset.pattern.permute.xlu0 0
        %311 = vperm.xlu0 %310, %v257
        %v312 = vpop.permute.xlu0 %311
        %315 = vset.pattern.permute.xlu0 0
        %316 = vperm.xlu0 %315, %v258
        %v317 = vpop.permute.xlu0 %316
        %320 = vset.pattern.permute.xlu0 0
        %321 = vperm.xlu0 %320, %v259
        %v322 = vpop.permute.xlu0 %321
        %325 = vset.pattern.permute.xlu0 0
        %326 = vperm.xlu0 %325, %v260
        %v327 = vpop.permute.xlu0 %326
        %330 = vset.pattern.permute.xlu0 0
        %331 = vperm.xlu0 %330, %v261
        %v332 = vpop.permute.xlu0 %331
        %335 = vset.pattern.permute.xlu0 0
        %336 = vperm.xlu0 %335, %v262
        %v337 = vpop.permute.xlu0 %336
        %340 = vset.pattern.permute.xlu0 0
        %341 = vperm.xlu0 %340, %v263
        %v342 = vpop.permute.xlu0 %341
        %345 = vset.pattern.permute.xlu0 0
        %346 = vperm.xlu0 %345, %v264
        %v347 = vpop.permute.xlu0 %346
        %350 = vset.pattern.permute.xlu0 0
        %351 = vperm.xlu0 %350, %v265
        %v352 = vpop.permute.xlu0 %351
        %355 = vset.pattern.permute.xlu0 0
        %356 = vperm.xlu0 %355, %v266
        %v357 = vpop.permute.xlu0 %356
        %360 = vset.pattern.permute.xlu0 0
        %361 = vperm.xlu0 %360, %v267
        %v362 = vpop.permute.xlu0 %361
        %365 = vset.pattern.permute.xlu0 0
        %366 = vperm.xlu0 %365, %v268
        %v367 = vpop.permute.xlu0 %366
        %370 = vset.pattern.permute.xlu0 0
        %371 = vperm.xlu0 %370, %v269
        %v372 = vpop.permute.xlu0 %371
        %375 = vset.pattern.permute.xlu0 0
        %376 = vperm.xlu0 %375, %v270
        %v377 = vpop.permute.xlu0 %376
        %380 = vset.pattern.permute.xlu0 0
        %381 = vperm.xlu0 %380, %v271
        %v382 = vpop.permute.xlu0 %381
        %v384 = vand.u32 2147483647, %v256
        %v385 = vand.u32 2147483647, %v257
        %v386 = vand.u32 2147483647, %v258
        %v387 = vand.u32 2147483647, %v259
        %v388 = vand.u32 2147483647, %v260
        %v389 = vand.u32 2147483647, %v261
        %v390 = vand.u32 2147483647, %v262
        %v391 = vand.u32 2147483647, %v263
        %v392 = vand.u32 2147483647, %v264
        %v393 = vand.u32 2147483647, %v265
        %v394 = vand.u32 2147483647, %v266
        %v395 = vand.u32 2147483647, %v267
        %v396 = vand.u32 2147483647, %v268
        %v397 = vand.u32 2147483647, %v269
        %v398 = vand.u32 2147483647, %v270
        %v399 = vand.u32 2147483647, %v271
        %401 = vset.pattern.permute.xlu0 0
        %402 = vperm.xlu0 %401, %v384
        %v403 = vpop.permute.xlu0 %402
        %406 = vset.pattern.permute.xlu0 0
        %407 = vperm.xlu0 %406, %v385
        %v408 = vpop.permute.xlu0 %407
        %411 = vset.pattern.permute.xlu0 0
        %412 = vperm.xlu0 %411, %v386
        %v413 = vpop.permute.xlu0 %412
        %416 = vset.pattern.permute.xlu0 0
        %417 = vperm.xlu0 %416, %v387
        %v418 = vpop.permute.xlu0 %417
        %421 = vset.pattern.permute.xlu0 0
        %422 = vperm.xlu0 %421, %v388
        %v423 = vpop.permute.xlu0 %422
        %426 = vset.pattern.permute.xlu0 0
        %427 = vperm.xlu0 %426, %v389
        %v428 = vpop.permute.xlu0 %427
        %431 = vset.pattern.permute.xlu0 0
        %432 = vperm.xlu0 %431, %v390
        %v433 = vpop.permute.xlu0 %432
        %436 = vset.pattern.permute.xlu0 0
        %437 = vperm.xlu0 %436, %v391
        %v438 = vpop.permute.xlu0 %437
        %441 = vset.pattern.permute.xlu0 0
        %442 = vperm.xlu0 %441, %v392
        %v443 = vpop.permute.xlu0 %442
        %446 = vset.pattern.permute.xlu0 0
        %447 = vperm.xlu0 %446, %v393
        %v448 = vpop.permute.xlu0 %447
        %451 = vset.pattern.permute.xlu0 0
        %452 = vperm.xlu0 %451, %v394
        %v453 = vpop.permute.xlu0 %452
        %456 = vset.pattern.permute.xlu0 0
        %457 = vperm.xlu0 %456, %v395
        %v458 = vpop.permute.xlu0 %457
        %461 = vset.pattern.permute.xlu0 0
        %462 = vperm.xlu0 %461, %v396
        %v463 = vpop.permute.xlu0 %462
        %466 = vset.pattern.permute.xlu0 0
        %467 = vperm.xlu0 %466, %v397
        %v468 = vpop.permute.xlu0 %467
        %471 = vset.pattern.permute.xlu0 0
        %472 = vperm.xlu0 %471, %v398
        %v473 = vpop.permute.xlu0 %472
        %476 = vset.pattern.permute.xlu0 0
        %477 = vperm.xlu0 %476, %v399
        %v478 = vpop.permute.xlu0 %477
        %v480 = vsub.f32 %v307, %v272
        %v481 = vsub.f32 %v312, %v273
        %v482 = vsub.f32 %v317, %v274
        %v483 = vsub.f32 %v322, %v275
        %v484 = vsub.f32 %v327, %v276
        %v485 = vsub.f32 %v332, %v277
        %v486 = vsub.f32 %v337, %v278
        %v487 = vsub.f32 %v342, %v279
        %v488 = vsub.f32 %v347, %v280
        %v489 = vsub.f32 %v352, %v281
        %v490 = vsub.f32 %v357, %v282
        %v491 = vsub.f32 %v362, %v283
        %v492 = vsub.f32 %v367, %v284
        %v493 = vsub.f32 %v372, %v285
        %v494 = vsub.f32 %v377, %v286
        %v495 = vsub.f32 %v382, %v287
        %v496 = vand.u32 2147483647, %v480
        %v497 = vand.u32 2147483647, %v481
        %v498 = vand.u32 2147483647, %v482
        %v499 = vand.u32 2147483647, %v483
        %v500 = vand.u32 2147483647, %v484
        %v501 = vand.u32 2147483647, %v485
        %v502 = vand.u32 2147483647, %v486
        %v503 = vand.u32 2147483647, %v487
        %v504 = vand.u32 2147483647, %v488
        %v505 = vand.u32 2147483647, %v489
        %v506 = vand.u32 2147483647, %v490
        %v507 = vand.u32 2147483647, %v491
        %v508 = vand.u32 2147483647, %v492
        %v509 = vand.u32 2147483647, %v493
        %v510 = vand.u32 2147483647, %v494
        %v511 = vand.u32 2147483647, %v495
        %v512 = vadd.f32 %v496, %v497
        %v513 = vadd.f32 %v512, %v498
        %v514 = vadd.f32 %v513, %v499
        %v515 = vadd.f32 %v514, %v500
        %v516 = vadd.f32 %v515, %v501
        %v517 = vadd.f32 %v516, %v502
        %v518 = vadd.f32 %v517, %v503
        %v519 = vadd.f32 %v518, %v504
        %v520 = vadd.f32 %v519, %v505
        %v521 = vadd.f32 %v520, %v506
        %v522 = vadd.f32 %v521, %v507
        %v523 = vadd.f32 %v522, %v508
        %v524 = vadd.f32 %v523, %v509
        %v525 = vadd.f32 %v524, %v510
        %v526 = vadd.f32 %v525, %v511
        %v527 = vrot.slane %v526, 4
        %v528 = vadd.f32 %v526, %v527
        %v529 = vrot.slane %v528, 2
        %v530 = vadd.f32 %v528, %v529
        %v531 = vrot.slane %v530, 1
        %v532 = vadd.f32 %v530, %v531
        %v533 = vmax.f32 %v403, %v288
        %v534 = vmax.f32 %v408, %v289
        %v535 = vmax.f32 %v413, %v290
        %v536 = vmax.f32 %v418, %v291
        %v537 = vmax.f32 %v423, %v292
        %v538 = vmax.f32 %v428, %v293
        %v539 = vmax.f32 %v433, %v294
        %v540 = vmax.f32 %v438, %v295
        %v541 = vmax.f32 %v443, %v296
        %v542 = vmax.f32 %v448, %v297
        %v543 = vmax.f32 %v453, %v298
        %v544 = vmax.f32 %v458, %v299
        %v545 = vmax.f32 %v463, %v300
        %v546 = vmax.f32 %v468, %v301
        %v547 = vmax.f32 %v473, %v302
        %v548 = vmax.f32 %v478, %v303
        %v549 = vadd.f32 %v533, %v534
        %v550 = vadd.f32 %v549, %v535
        %v551 = vadd.f32 %v550, %v536
        %v552 = vadd.f32 %v551, %v537
        %v553 = vadd.f32 %v552, %v538
        %v554 = vadd.f32 %v553, %v539
        %v555 = vadd.f32 %v554, %v540
        %v556 = vadd.f32 %v555, %v541
        %v557 = vadd.f32 %v556, %v542
        %v558 = vadd.f32 %v557, %v543
        %v559 = vadd.f32 %v558, %v544
        %v560 = vadd.f32 %v559, %v545
        %v561 = vadd.f32 %v560, %v546
        %v562 = vadd.f32 %v561, %v547
        %v563 = vadd.f32 %v562, %v548
        %v564 = vrot.slane %v563, 4
        %v565 = vadd.f32 %v563, %v564
        %v566 = vrot.slane %v565, 2
        %v567 = vadd.f32 %v565, %v566
        %v568 = vrot.slane %v567, 1
        %v569 = vadd.f32 %v567, %v568
        %570 = vset.pattern.permute.xlu0 1
        %571 = vperm.xlu0 %570, %v256
        %v572 = vpop.permute.xlu0 %571
        %574 = vset.pattern.permute.xlu0 1
        %575 = vperm.xlu0 %574, %v257
        %v576 = vpop.permute.xlu0 %575
        %578 = vset.pattern.permute.xlu0 1
        %579 = vperm.xlu0 %578, %v258
        %v580 = vpop.permute.xlu0 %579
        %582 = vset.pattern.permute.xlu0 1
        %583 = vperm.xlu0 %582, %v259
        %v584 = vpop.permute.xlu0 %583
        %586 = vset.pattern.permute.xlu0 1
        %587 = vperm.xlu0 %586, %v260
        %v588 = vpop.permute.xlu0 %587
        %590 = vset.pattern.permute.xlu0 1
        %591 = vperm.xlu0 %590, %v261
        %v592 = vpop.permute.xlu0 %591
        %594 = vset.pattern.permute.xlu0 1
        %595 = vperm.xlu0 %594, %v262
        %v596 = vpop.permute.xlu0 %595
        %598 = vset.pattern.permute.xlu0 1
        %599 = vperm.xlu0 %598, %v263
        %v600 = vpop.permute.xlu0 %599
        %602 = vset.pattern.permute.xlu0 1
        %603 = vperm.xlu0 %602, %v264
        %v604 = vpop.permute.xlu0 %603
        %606 = vset.pattern.permute.xlu0 1
        %607 = vperm.xlu0 %606, %v265
        %v608 = vpop.permute.xlu0 %607
        %610 = vset.pattern.permute.xlu0 1
        %611 = vperm.xlu0 %610, %v266
        %v612 = vpop.permute.xlu0 %611
        %614 = vset.pattern.permute.xlu0 1
        %615 = vperm.xlu0 %614, %v267
        %v616 = vpop.permute.xlu0 %615
        %618 = vset.pattern.permute.xlu0 1
        %619 = vperm.xlu0 %618, %v268
        %v620 = vpop.permute.xlu0 %619
        %622 = vset.pattern.permute.xlu0 1
        %623 = vperm.xlu0 %622, %v269
        %v624 = vpop.permute.xlu0 %623
        %626 = vset.pattern.permute.xlu0 1
        %627 = vperm.xlu0 %626, %v270
        %v628 = vpop.permute.xlu0 %627
        %630 = vset.pattern.permute.xlu0 1
        %631 = vperm.xlu0 %630, %v271
        %v632 = vpop.permute.xlu0 %631
        %634 = vset.pattern.permute.xlu0 1
        %635 = vperm.xlu0 %634, %v384
        %v636 = vpop.permute.xlu0 %635
        %638 = vset.pattern.permute.xlu0 1
        %639 = vperm.xlu0 %638, %v385
        %v640 = vpop.permute.xlu0 %639
        %642 = vset.pattern.permute.xlu0 1
        %643 = vperm.xlu0 %642, %v386
        %v644 = vpop.permute.xlu0 %643
        %646 = vset.pattern.permute.xlu0 1
        %647 = vperm.xlu0 %646, %v387
        %v648 = vpop.permute.xlu0 %647
        %650 = vset.pattern.permute.xlu0 1
        %651 = vperm.xlu0 %650, %v388
        %v652 = vpop.permute.xlu0 %651
        %654 = vset.pattern.permute.xlu0 1
        %655 = vperm.xlu0 %654, %v389
        %v656 = vpop.permute.xlu0 %655
        %658 = vset.pattern.permute.xlu0 1
        %659 = vperm.xlu0 %658, %v390
        %v660 = vpop.permute.xlu0 %659
        %662 = vset.pattern.permute.xlu0 1
        %663 = vperm.xlu0 %662, %v391
        %v664 = vpop.permute.xlu0 %663
        %666 = vset.pattern.permute.xlu0 1
        %667 = vperm.xlu0 %666, %v392
        %v668 = vpop.permute.xlu0 %667
        %670 = vset.pattern.permute.xlu0 1
        %671 = vperm.xlu0 %670, %v393
        %v672 = vpop.permute.xlu0 %671
        %674 = vset.pattern.permute.xlu0 1
        %675 = vperm.xlu0 %674, %v394
        %v676 = vpop.permute.xlu0 %675
        %678 = vset.pattern.permute.xlu0 1
        %679 = vperm.xlu0 %678, %v395
        %v680 = vpop.permute.xlu0 %679
        %682 = vset.pattern.permute.xlu0 1
        %683 = vperm.xlu0 %682, %v396
        %v684 = vpop.permute.xlu0 %683
        %686 = vset.pattern.permute.xlu0 1
        %687 = vperm.xlu0 %686, %v397
        %v688 = vpop.permute.xlu0 %687
        %690 = vset.pattern.permute.xlu0 1
        %691 = vperm.xlu0 %690, %v398
        %v692 = vpop.permute.xlu0 %691
        %694 = vset.pattern.permute.xlu0 1
        %695 = vperm.xlu0 %694, %v399
        %v696 = vpop.permute.xlu0 %695
        %v698 = vsub.f32 %v572, %v272
        %v699 = vsub.f32 %v576, %v273
        %v700 = vsub.f32 %v580, %v274
        %v701 = vsub.f32 %v584, %v275
        %v702 = vsub.f32 %v588, %v276
        %v703 = vsub.f32 %v592, %v277
        %v704 = vsub.f32 %v596, %v278
        %v705 = vsub.f32 %v600, %v279
        %v706 = vsub.f32 %v604, %v280
        %v707 = vsub.f32 %v608, %v281
        %v708 = vsub.f32 %v612, %v282
        %v709 = vsub.f32 %v616, %v283
        %v710 = vsub.f32 %v620, %v284
        %v711 = vsub.f32 %v624, %v285
        %v712 = vsub.f32 %v628, %v286
        %v713 = vsub.f32 %v632, %v287
        %v714 = vand.u32 2147483647, %v698
        %v715 = vand.u32 2147483647, %v699
        %v716 = vand.u32 2147483647, %v700
        %v717 = vand.u32 2147483647, %v701
        %v718 = vand.u32 2147483647, %v702
        %v719 = vand.u32 2147483647, %v703
        %v720 = vand.u32 2147483647, %v704
        %v721 = vand.u32 2147483647, %v705
        %v722 = vand.u32 2147483647, %v706
        %v723 = vand.u32 2147483647, %v707
        %v724 = vand.u32 2147483647, %v708
        %v725 = vand.u32 2147483647, %v709
        %v726 = vand.u32 2147483647, %v710
        %v727 = vand.u32 2147483647, %v711
        %v728 = vand.u32 2147483647, %v712
        %v729 = vand.u32 2147483647, %v713
        %v730 = vadd.f32 %v714, %v715
        %v731 = vadd.f32 %v730, %v716
        %v732 = vadd.f32 %v731, %v717
        %v733 = vadd.f32 %v732, %v718
        %v734 = vadd.f32 %v733, %v719
        %v735 = vadd.f32 %v734, %v720
        %v736 = vadd.f32 %v735, %v721
        %v737 = vadd.f32 %v736, %v722
        %v738 = vadd.f32 %v737, %v723
        %v739 = vadd.f32 %v738, %v724
        %v740 = vadd.f32 %v739, %v725
        %v741 = vadd.f32 %v740, %v726
        %v742 = vadd.f32 %v741, %v727
        %v743 = vadd.f32 %v742, %v728
        %v744 = vadd.f32 %v743, %v729
        %v745 = vrot.slane %v744, 4
        %v746 = vadd.f32 %v744, %v745
        %v747 = vrot.slane %v746, 2
        %v748 = vadd.f32 %v746, %v747
        %v749 = vrot.slane %v748, 1
        %v750 = vadd.f32 %v748, %v749
        %v751 = vmax.f32 %v636, %v288
        %v752 = vmax.f32 %v640, %v289
        %v753 = vmax.f32 %v644, %v290
        %v754 = vmax.f32 %v648, %v291
        %v755 = vmax.f32 %v652, %v292
        %v756 = vmax.f32 %v656, %v293
        %v757 = vmax.f32 %v660, %v294
        %v758 = vmax.f32 %v664, %v295
        %v759 = vmax.f32 %v668, %v296
        %v760 = vmax.f32 %v672, %v297
        %v761 = vmax.f32 %v676, %v298
        %v762 = vmax.f32 %v680, %v299
        %v763 = vmax.f32 %v684, %v300
        %v764 = vmax.f32 %v688, %v301
        %v765 = vmax.f32 %v692, %v302
        %v766 = vmax.f32 %v696, %v303
        %v767 = vadd.f32 %v751, %v752
        %v768 = vadd.f32 %v767, %v753
        %v769 = vadd.f32 %v768, %v754
        %v770 = vadd.f32 %v769, %v755
        %v771 = vadd.f32 %v770, %v756
        %v772 = vadd.f32 %v771, %v757
        %v773 = vadd.f32 %v772, %v758
        %v774 = vadd.f32 %v773, %v759
        %v775 = vadd.f32 %v774, %v760
        %v776 = vadd.f32 %v775, %v761
        %v777 = vadd.f32 %v776, %v762
        %v778 = vadd.f32 %v777, %v763
        %v779 = vadd.f32 %v778, %v764
        %v780 = vadd.f32 %v779, %v765
        %v781 = vadd.f32 %v780, %v766
        %v782 = vrot.slane %v781, 4
        %v783 = vadd.f32 %v781, %v782
        %v784 = vrot.slane %v783, 2
        %v785 = vadd.f32 %v783, %v784
        %v786 = vrot.slane %v785, 1
        %v787 = vadd.f32 %v785, %v786
        %788 = vset.pattern.permute.xlu0 2
        %789 = vperm.xlu0 %788, %v256
        %v790 = vpop.permute.xlu0 %789
        %792 = vset.pattern.permute.xlu0 2
        %793 = vperm.xlu0 %792, %v257
        %v794 = vpop.permute.xlu0 %793
        %796 = vset.pattern.permute.xlu0 2
        %797 = vperm.xlu0 %796, %v258
        %v798 = vpop.permute.xlu0 %797
        %800 = vset.pattern.permute.xlu0 2
        %801 = vperm.xlu0 %800, %v259
        %v802 = vpop.permute.xlu0 %801
        %804 = vset.pattern.permute.xlu0 2
        %805 = vperm.xlu0 %804, %v260
        %v806 = vpop.permute.xlu0 %805
        %808 = vset.pattern.permute.xlu0 2
        %809 = vperm.xlu0 %808, %v261
        %v810 = vpop.permute.xlu0 %809
        %812 = vset.pattern.permute.xlu0 2
        %813 = vperm.xlu0 %812, %v262
        %v814 = vpop.permute.xlu0 %813
        %816 = vset.pattern.permute.xlu0 2
        %817 = vperm.xlu0 %816, %v263
        %v818 = vpop.permute.xlu0 %817
        %820 = vset.pattern.permute.xlu0 2
        %821 = vperm.xlu0 %820, %v264
        %v822 = vpop.permute.xlu0 %821
        %824 = vset.pattern.permute.xlu0 2
        %825 = vperm.xlu0 %824, %v265
        %v826 = vpop.permute.xlu0 %825
        %828 = vset.pattern.permute.xlu0 2
        %829 = vperm.xlu0 %828, %v266
        %v830 = vpop.permute.xlu0 %829
        %832 = vset.pattern.permute.xlu0 2
        %833 = vperm.xlu0 %832, %v267
        %v834 = vpop.permute.xlu0 %833
        %836 = vset.pattern.permute.xlu0 2
        %837 = vperm.xlu0 %836, %v268
        %v838 = vpop.permute.xlu0 %837
        %840 = vset.pattern.permute.xlu0 2
        %841 = vperm.xlu0 %840, %v269
        %v842 = vpop.permute.xlu0 %841
        %844 = vset.pattern.permute.xlu0 2
        %845 = vperm.xlu0 %844, %v270
        %v846 = vpop.permute.xlu0 %845
        %848 = vset.pattern.permute.xlu0 2
        %849 = vperm.xlu0 %848, %v271
        %v850 = vpop.permute.xlu0 %849
        %852 = vset.pattern.permute.xlu0 2
        %853 = vperm.xlu0 %852, %v384
        %v854 = vpop.permute.xlu0 %853
        %856 = vset.pattern.permute.xlu0 2
        %857 = vperm.xlu0 %856, %v385
        %v858 = vpop.permute.xlu0 %857
        %860 = vset.pattern.permute.xlu0 2
        %861 = vperm.xlu0 %860, %v386
        %v862 = vpop.permute.xlu0 %861
        %864 = vset.pattern.permute.xlu0 2
        %865 = vperm.xlu0 %864, %v387
        %v866 = vpop.permute.xlu0 %865
        %868 = vset.pattern.permute.xlu0 2
        %869 = vperm.xlu0 %868, %v388
        %v870 = vpop.permute.xlu0 %869
        %872 = vset.pattern.permute.xlu0 2
        %873 = vperm.xlu0 %872, %v389
        %v874 = vpop.permute.xlu0 %873
        %876 = vset.pattern.permute.xlu0 2
        %877 = vperm.xlu0 %876, %v390
        %v878 = vpop.permute.xlu0 %877
        %880 = vset.pattern.permute.xlu0 2
        %881 = vperm.xlu0 %880, %v391
        %v882 = vpop.permute.xlu0 %881
        %884 = vset.pattern.permute.xlu0 2
        %885 = vperm.xlu0 %884, %v392
        %v886 = vpop.permute.xlu0 %885
        %888 = vset.pattern.permute.xlu0 2
        %889 = vperm.xlu0 %888, %v393
        %v890 = vpop.permute.xlu0 %889
        %892 = vset.pattern.permute.xlu0 2
        %893 = vperm.xlu0 %892, %v394
        %v894 = vpop.permute.xlu0 %893
        %896 = vset.pattern.permute.xlu0 2
        %897 = vperm.xlu0 %896, %v395
        %v898 = vpop.permute.xlu0 %897
        %900 = vset.pattern.permute.xlu0 2
        %901 = vperm.xlu0 %900, %v396
        %v902 = vpop.permute.xlu0 %901
        %904 = vset.pattern.permute.xlu0 2
        %905 = vperm.xlu0 %904, %v397
        %v906 = vpop.permute.xlu0 %905
        %908 = vset.pattern.permute.xlu0 2
        %909 = vperm.xlu0 %908, %v398
        %v910 = vpop.permute.xlu0 %909
        %912 = vset.pattern.permute.xlu0 2
        %913 = vperm.xlu0 %912, %v399
        %v914 = vpop.permute.xlu0 %913
        %v916 = vsub.f32 %v790, %v272
        %v917 = vsub.f32 %v794, %v273
        %v918 = vsub.f32 %v798, %v274
        %v919 = vsub.f32 %v802, %v275
        %v920 = vsub.f32 %v806, %v276
        %v921 = vsub.f32 %v810, %v277
        %v922 = vsub.f32 %v814, %v278
        %v923 = vsub.f32 %v818, %v279
        %v924 = vsub.f32 %v822, %v280
        %v925 = vsub.f32 %v826, %v281
        %v926 = vsub.f32 %v830, %v282
        %v927 = vsub.f32 %v834, %v283
        %v928 = vsub.f32 %v838, %v284
        %v929 = vsub.f32 %v842, %v285
        %v930 = vsub.f32 %v846, %v286
        %v931 = vsub.f32 %v850, %v287
        %v932 = vand.u32 2147483647, %v916
        %v933 = vand.u32 2147483647, %v917
        %v934 = vand.u32 2147483647, %v918
        %v935 = vand.u32 2147483647, %v919
        %v936 = vand.u32 2147483647, %v920
        %v937 = vand.u32 2147483647, %v921
        %v938 = vand.u32 2147483647, %v922
        %v939 = vand.u32 2147483647, %v923
        %v940 = vand.u32 2147483647, %v924
        %v941 = vand.u32 2147483647, %v925
        %v942 = vand.u32 2147483647, %v926
        %v943 = vand.u32 2147483647, %v927
        %v944 = vand.u32 2147483647, %v928
        %v945 = vand.u32 2147483647, %v929
        %v946 = vand.u32 2147483647, %v930
        %v947 = vand.u32 2147483647, %v931
        %v948 = vadd.f32 %v932, %v933
        %v949 = vadd.f32 %v948, %v934
        %v950 = vadd.f32 %v949, %v935
        %v951 = vadd.f32 %v950, %v936
        %v952 = vadd.f32 %v951, %v937
        %v953 = vadd.f32 %v952, %v938
        %v954 = vadd.f32 %v953, %v939
        %v955 = vadd.f32 %v954, %v940
        %v956 = vadd.f32 %v955, %v941
        %v957 = vadd.f32 %v956, %v942
        %v958 = vadd.f32 %v957, %v943
        %v959 = vadd.f32 %v958, %v944
        %v960 = vadd.f32 %v959, %v945
        %v961 = vadd.f32 %v960, %v946
        %v962 = vadd.f32 %v961, %v947
        %v963 = vrot.slane %v962, 4
        %v964 = vadd.f32 %v962, %v963
        %v965 = vrot.slane %v964, 2
        %v966 = vadd.f32 %v964, %v965
        %v967 = vrot.slane %v966, 1
        %v968 = vadd.f32 %v966, %v967
        %v969 = vmax.f32 %v854, %v288
        %v970 = vmax.f32 %v858, %v289
        %v971 = vmax.f32 %v862, %v290
        %v972 = vmax.f32 %v866, %v291
        %v973 = vmax.f32 %v870, %v292
        %v974 = vmax.f32 %v874, %v293
        %v975 = vmax.f32 %v878, %v294
        %v976 = vmax.f32 %v882, %v295
        %v977 = vmax.f32 %v886, %v296
        %v978 = vmax.f32 %v890, %v297
        %v979 = vmax.f32 %v894, %v298
        %v980 = vmax.f32 %v898, %v299
        %v981 = vmax.f32 %v902, %v300
        %v982 = vmax.f32 %v906, %v301
        %v983 = vmax.f32 %v910, %v302
        %v984 = vmax.f32 %v914, %v303
        %v985 = vadd.f32 %v969, %v970
        %v986 = vadd.f32 %v985, %v971
        %v987 = vadd.f32 %v986, %v972
        %v988 = vadd.f32 %v987, %v973
        %v989 = vadd.f32 %v988, %v974
        %v990 = vadd.f32 %v989, %v975
        %v991 = vadd.f32 %v990, %v976
        %v992 = vadd.f32 %v991, %v977
        %v993 = vadd.f32 %v992, %v978
        %v994 = vadd.f32 %v993, %v979
        %v995 = vadd.f32 %v994, %v980
        %v996 = vadd.f32 %v995, %v981
        %v997 = vadd.f32 %v996, %v982
        %v998 = vadd.f32 %v997, %v983
        %v999 = vadd.f32 %v998, %v984
        %v1000 = vrot.slane %v999, 4
        %v1001 = vadd.f32 %v999, %v1000
        %v1002 = vrot.slane %v1001, 2
        %v1003 = vadd.f32 %v1001, %v1002
        %v1004 = vrot.slane %v1003, 1
        %v1005 = vadd.f32 %v1003, %v1004
        %1006 = vset.pattern.permute.xlu0 3
        %1007 = vperm.xlu0 %1006, %v256
        %v1008 = vpop.permute.xlu0 %1007
        %1010 = vset.pattern.permute.xlu0 3
        %1011 = vperm.xlu0 %1010, %v257
        %v1012 = vpop.permute.xlu0 %1011
        %1014 = vset.pattern.permute.xlu0 3
        %1015 = vperm.xlu0 %1014, %v258
        %v1016 = vpop.permute.xlu0 %1015
        %1018 = vset.pattern.permute.xlu0 3
        %1019 = vperm.xlu0 %1018, %v259
        %v1020 = vpop.permute.xlu0 %1019
        %1022 = vset.pattern.permute.xlu0 3
        %1023 = vperm.xlu0 %1022, %v260
        %v1024 = vpop.permute.xlu0 %1023
        %1026 = vset.pattern.permute.xlu0 3
        %1027 = vperm.xlu0 %1026, %v261
        %v1028 = vpop.permute.xlu0 %1027
        %1030 = vset.pattern.permute.xlu0 3
        %1031 = vperm.xlu0 %1030, %v262
        %v1032 = vpop.permute.xlu0 %1031
        %1034 = vset.pattern.permute.xlu0 3
        %1035 = vperm.xlu0 %1034, %v263
        %v1036 = vpop.permute.xlu0 %1035
        %1038 = vset.pattern.permute.xlu0 3
        %1039 = vperm.xlu0 %1038, %v264
        %v1040 = vpop.permute.xlu0 %1039
        %1042 = vset.pattern.permute.xlu0 3
        %1043 = vperm.xlu0 %1042, %v265
        %v1044 = vpop.permute.xlu0 %1043
        %1046 = vset.pattern.permute.xlu0 3
        %1047 = vperm.xlu0 %1046, %v266
        %v1048 = vpop.permute.xlu0 %1047
        %1050 = vset.pattern.permute.xlu0 3
        %1051 = vperm.xlu0 %1050, %v267
        %v1052 = vpop.permute.xlu0 %1051
        %1054 = vset.pattern.permute.xlu0 3
        %1055 = vperm.xlu0 %1054, %v268
        %v1056 = vpop.permute.xlu0 %1055
        %1058 = vset.pattern.permute.xlu0 3
        %1059 = vperm.xlu0 %1058, %v269
        %v1060 = vpop.permute.xlu0 %1059
        %1062 = vset.pattern.permute.xlu0 3
        %1063 = vperm.xlu0 %1062, %v270
        %v1064 = vpop.permute.xlu0 %1063
        %1066 = vset.pattern.permute.xlu0 3
        %1067 = vperm.xlu0 %1066, %v271
        %v1068 = vpop.permute.xlu0 %1067
        %1070 = vset.pattern.permute.xlu0 3
        %1071 = vperm.xlu0 %1070, %v384
        %v1072 = vpop.permute.xlu0 %1071
        %1074 = vset.pattern.permute.xlu0 3
        %1075 = vperm.xlu0 %1074, %v385
        %v1076 = vpop.permute.xlu0 %1075
        %1078 = vset.pattern.permute.xlu0 3
        %1079 = vperm.xlu0 %1078, %v386
        %v1080 = vpop.permute.xlu0 %1079
        %1082 = vset.pattern.permute.xlu0 3
        %1083 = vperm.xlu0 %1082, %v387
        %v1084 = vpop.permute.xlu0 %1083
        %1086 = vset.pattern.permute.xlu0 3
        %1087 = vperm.xlu0 %1086, %v388
        %v1088 = vpop.permute.xlu0 %1087
        %1090 = vset.pattern.permute.xlu0 3
        %1091 = vperm.xlu0 %1090, %v389
        %v1092 = vpop.permute.xlu0 %1091
        %1094 = vset.pattern.permute.xlu0 3
        %1095 = vperm.xlu0 %1094, %v390
        %v1096 = vpop.permute.xlu0 %1095
        %1098 = vset.pattern.permute.xlu0 3
        %1099 = vperm.xlu0 %1098, %v391
        %v1100 = vpop.permute.xlu0 %1099
        %1102 = vset.pattern.permute.xlu0 3
        %1103 = vperm.xlu0 %1102, %v392
        %v1104 = vpop.permute.xlu0 %1103
        %1106 = vset.pattern.permute.xlu0 3
        %1107 = vperm.xlu0 %1106, %v393
        %v1108 = vpop.permute.xlu0 %1107
        %1110 = vset.pattern.permute.xlu0 3
        %1111 = vperm.xlu0 %1110, %v394
        %v1112 = vpop.permute.xlu0 %1111
        %1114 = vset.pattern.permute.xlu0 3
        %1115 = vperm.xlu0 %1114, %v395
        %v1116 = vpop.permute.xlu0 %1115
        %1118 = vset.pattern.permute.xlu0 3
        %1119 = vperm.xlu0 %1118, %v396
        %v1120 = vpop.permute.xlu0 %1119
        %1122 = vset.pattern.permute.xlu0 3
        %1123 = vperm.xlu0 %1122, %v397
        %v1124 = vpop.permute.xlu0 %1123
        %1126 = vset.pattern.permute.xlu0 3
        %1127 = vperm.xlu0 %1126, %v398
        %v1128 = vpop.permute.xlu0 %1127
        %1130 = vset.pattern.permute.xlu0 3
        %1131 = vperm.xlu0 %1130, %v399
        %v1132 = vpop.permute.xlu0 %1131
        %v1134 = vsub.f32 %v1008, %v272
        %v1135 = vsub.f32 %v1012, %v273
        %v1136 = vsub.f32 %v1016, %v274
        %v1137 = vsub.f32 %v1020, %v275
        %v1138 = vsub.f32 %v1024, %v276
        %v1139 = vsub.f32 %v1028, %v277
        %v1140 = vsub.f32 %v1032, %v278
        %v1141 = vsub.f32 %v1036, %v279
        %v1142 = vsub.f32 %v1040, %v280
        %v1143 = vsub.f32 %v1044, %v281
        %v1144 = vsub.f32 %v1048, %v282
        %v1145 = vsub.f32 %v1052, %v283
        %v1146 = vsub.f32 %v1056, %v284
        %v1147 = vsub.f32 %v1060, %v285
        %v1148 = vsub.f32 %v1064, %v286
        %v1149 = vsub.f32 %v1068, %v287
        %v1150 = vand.u32 2147483647, %v1134
        %v1151 = vand.u32 2147483647, %v1135
        %v1152 = vand.u32 2147483647, %v1136
        %v1153 = vand.u32 2147483647, %v1137
        %v1154 = vand.u32 2147483647, %v1138
        %v1155 = vand.u32 2147483647, %v1139
        %v1156 = vand.u32 2147483647, %v1140
        %v1157 = vand.u32 2147483647, %v1141
        %v1158 = vand.u32 2147483647, %v1142
        %v1159 = vand.u32 2147483647, %v1143
        %v1160 = vand.u32 2147483647, %v1144
        %v1161 = vand.u32 2147483647, %v1145
        %v1162 = vand.u32 2147483647, %v1146
        %v1163 = vand.u32 2147483647, %v1147
        %v1164 = vand.u32 2147483647, %v1148
        %v1165 = vand.u32 2147483647, %v1149
        %v1166 = vadd.f32 %v1150, %v1151
        %v1167 = vadd.f32 %v1166, %v1152
        %v1168 = vadd.f32 %v1167, %v1153
        %v1169 = vadd.f32 %v1168, %v1154
        %v1170 = vadd.f32 %v1169, %v1155
        %v1171 = vadd.f32 %v1170, %v1156
        %v1172 = vadd.f32 %v1171, %v1157
        %v1173 = vadd.f32 %v1172, %v1158
        %v1174 = vadd.f32 %v1173, %v1159
        %v1175 = vadd.f32 %v1174, %v1160
        %v1176 = vadd.f32 %v1175, %v1161
        %v1177 = vadd.f32 %v1176, %v1162
        %v1178 = vadd.f32 %v1177, %v1163
        %v1179 = vadd.f32 %v1178, %v1164
        %v1180 = vadd.f32 %v1179, %v1165
        %v1181 = vrot.slane %v1180, 4
        %v1182 = vadd.f32 %v1180, %v1181
        %v1183 = vrot.slane %v1182, 2
        %v1184 = vadd.f32 %v1182, %v1183
        %v1185 = vrot.slane %v1184, 1
        %v1186 = vadd.f32 %v1184, %v1185
        %v1187 = vmax.f32 %v1072, %v288
        %v1188 = vmax.f32 %v1076, %v289
        %v1189 = vmax.f32 %v1080, %v290
        %v1190 = vmax.f32 %v1084, %v291
        %v1191 = vmax.f32 %v1088, %v292
        %v1192 = vmax.f32 %v1092, %v293
        %v1193 = vmax.f32 %v1096, %v294
        %v1194 = vmax.f32 %v1100, %v295
        %v1195 = vmax.f32 %v1104, %v296
        %v1196 = vmax.f32 %v1108, %v297
        %v1197 = vmax.f32 %v1112, %v298
        %v1198 = vmax.f32 %v1116, %v299
        %v1199 = vmax.f32 %v1120, %v300
        %v1200 = vmax.f32 %v1124, %v301
        %v1201 = vmax.f32 %v1128, %v302
        %v1202 = vmax.f32 %v1132, %v303
        %v1203 = vadd.f32 %v1187, %v1188
        %v1204 = vadd.f32 %v1203, %v1189
        %v1205 = vadd.f32 %v1204, %v1190
        %v1206 = vadd.f32 %v1205, %v1191
        %v1207 = vadd.f32 %v1206, %v1192
        %v1208 = vadd.f32 %v1207, %v1193
        %v1209 = vadd.f32 %v1208, %v1194
        %v1210 = vadd.f32 %v1209, %v1195
        %v1211 = vadd.f32 %v1210, %v1196
        %v1212 = vadd.f32 %v1211, %v1197
        %v1213 = vadd.f32 %v1212, %v1198
        %v1214 = vadd.f32 %v1213, %v1199
        %v1215 = vadd.f32 %v1214, %v1200
        %v1216 = vadd.f32 %v1215, %v1201
        %v1217 = vadd.f32 %v1216, %v1202
        %v1218 = vrot.slane %v1217, 4
        %v1219 = vadd.f32 %v1217, %v1218
        %v1220 = vrot.slane %v1219, 2
        %v1221 = vadd.f32 %v1219, %v1220
        %v1222 = vrot.slane %v1221, 1
        %v1223 = vadd.f32 %v1221, %v1222
        %1224 = vset.pattern.permute.xlu0 4
        %1225 = vperm.xlu0 %1224, %v256
        %v1226 = vpop.permute.xlu0 %1225
        %1228 = vset.pattern.permute.xlu0 4
        %1229 = vperm.xlu0 %1228, %v257
        %v1230 = vpop.permute.xlu0 %1229
        %1232 = vset.pattern.permute.xlu0 4
        %1233 = vperm.xlu0 %1232, %v258
        %v1234 = vpop.permute.xlu0 %1233
        %1236 = vset.pattern.permute.xlu0 4
        %1237 = vperm.xlu0 %1236, %v259
        %v1238 = vpop.permute.xlu0 %1237
        %1240 = vset.pattern.permute.xlu0 4
        %1241 = vperm.xlu0 %1240, %v260
        %v1242 = vpop.permute.xlu0 %1241
        %1244 = vset.pattern.permute.xlu0 4
        %1245 = vperm.xlu0 %1244, %v261
        %v1246 = vpop.permute.xlu0 %1245
        %1248 = vset.pattern.permute.xlu0 4
        %1249 = vperm.xlu0 %1248, %v262
        %v1250 = vpop.permute.xlu0 %1249
        %1252 = vset.pattern.permute.xlu0 4
        %1253 = vperm.xlu0 %1252, %v263
        %v1254 = vpop.permute.xlu0 %1253
        %1256 = vset.pattern.permute.xlu0 4
        %1257 = vperm.xlu0 %1256, %v264
        %v1258 = vpop.permute.xlu0 %1257
        %1260 = vset.pattern.permute.xlu0 4
        %1261 = vperm.xlu0 %1260, %v265
        %v1262 = vpop.permute.xlu0 %1261
        %1264 = vset.pattern.permute.xlu0 4
        %1265 = vperm.xlu0 %1264, %v266
        %v1266 = vpop.permute.xlu0 %1265
        %1268 = vset.pattern.permute.xlu0 4
        %1269 = vperm.xlu0 %1268, %v267
        %v1270 = vpop.permute.xlu0 %1269
        %1272 = vset.pattern.permute.xlu0 4
        %1273 = vperm.xlu0 %1272, %v268
        %v1274 = vpop.permute.xlu0 %1273
        %1276 = vset.pattern.permute.xlu0 4
        %1277 = vperm.xlu0 %1276, %v269
        %v1278 = vpop.permute.xlu0 %1277
        %1280 = vset.pattern.permute.xlu0 4
        %1281 = vperm.xlu0 %1280, %v270
        %v1282 = vpop.permute.xlu0 %1281
        %1284 = vset.pattern.permute.xlu0 4
        %1285 = vperm.xlu0 %1284, %v271
        %v1286 = vpop.permute.xlu0 %1285
        %1288 = vset.pattern.permute.xlu0 4
        %1289 = vperm.xlu0 %1288, %v384
        %v1290 = vpop.permute.xlu0 %1289
        %1292 = vset.pattern.permute.xlu0 4
        %1293 = vperm.xlu0 %1292, %v385
        %v1294 = vpop.permute.xlu0 %1293
        %1296 = vset.pattern.permute.xlu0 4
        %1297 = vperm.xlu0 %1296, %v386
        %v1298 = vpop.permute.xlu0 %1297
        %1300 = vset.pattern.permute.xlu0 4
        %1301 = vperm.xlu0 %1300, %v387
        %v1302 = vpop.permute.xlu0 %1301
        %1304 = vset.pattern.permute.xlu0 4
        %1305 = vperm.xlu0 %1304, %v388
        %v1306 = vpop.permute.xlu0 %1305
        %1308 = vset.pattern.permute.xlu0 4
        %1309 = vperm.xlu0 %1308, %v389
        %v1310 = vpop.permute.xlu0 %1309
        %1312 = vset.pattern.permute.xlu0 4
        %1313 = vperm.xlu0 %1312, %v390
        %v1314 = vpop.permute.xlu0 %1313
        %1316 = vset.pattern.permute.xlu0 4
        %1317 = vperm.xlu0 %1316, %v391
        %v1318 = vpop.permute.xlu0 %1317
        %1320 = vset.pattern.permute.xlu0 4
        %1321 = vperm.xlu0 %1320, %v392
        %v1322 = vpop.permute.xlu0 %1321
        %1324 = vset.pattern.permute.xlu0 4
        %1325 = vperm.xlu0 %1324, %v393
        %v1326 = vpop.permute.xlu0 %1325
        %1328 = vset.pattern.permute.xlu0 4
        %1329 = vperm.xlu0 %1328, %v394
        %v1330 = vpop.permute.xlu0 %1329
        %1332 = vset.pattern.permute.xlu0 4
        %1333 = vperm.xlu0 %1332, %v395
        %v1334 = vpop.permute.xlu0 %1333
        %1336 = vset.pattern.permute.xlu0 4
        %1337 = vperm.xlu0 %1336, %v396
        %v1338 = vpop.permute.xlu0 %1337
        %1340 = vset.pattern.permute.xlu0 4
        %1341 = vperm.xlu0 %1340, %v397
        %v1342 = vpop.permute.xlu0 %1341
        %1344 = vset.pattern.permute.xlu0 4
        %1345 = vperm.xlu0 %1344, %v398
        %v1346 = vpop.permute.xlu0 %1345
        %1348 = vset.pattern.permute.xlu0 4
        %1349 = vperm.xlu0 %1348, %v399
        %v1350 = vpop.permute.xlu0 %1349
        %v1352 = vsub.f32 %v1226, %v272
        %v1353 = vsub.f32 %v1230, %v273
        %v1354 = vsub.f32 %v1234, %v274
        %v1355 = vsub.f32 %v1238, %v275
        %v1356 = vsub.f32 %v1242, %v276
        %v1357 = vsub.f32 %v1246, %v277
        %v1358 = vsub.f32 %v1250, %v278
        %v1359 = vsub.f32 %v1254, %v279
        %v1360 = vsub.f32 %v1258, %v280
        %v1361 = vsub.f32 %v1262, %v281
        %v1362 = vsub.f32 %v1266, %v282
        %v1363 = vsub.f32 %v1270, %v283
        %v1364 = vsub.f32 %v1274, %v284
        %v1365 = vsub.f32 %v1278, %v285
        %v1366 = vsub.f32 %v1282, %v286
        %v1367 = vsub.f32 %v1286, %v287
        %v1368 = vand.u32 2147483647, %v1352
        %v1369 = vand.u32 2147483647, %v1353
        %v1370 = vand.u32 2147483647, %v1354
        %v1371 = vand.u32 2147483647, %v1355
        %v1372 = vand.u32 2147483647, %v1356
        %v1373 = vand.u32 2147483647, %v1357
        %v1374 = vand.u32 2147483647, %v1358
        %v1375 = vand.u32 2147483647, %v1359
        %v1376 = vand.u32 2147483647, %v1360
        %v1377 = vand.u32 2147483647, %v1361
        %v1378 = vand.u32 2147483647, %v1362
        %v1379 = vand.u32 2147483647, %v1363
        %v1380 = vand.u32 2147483647, %v1364
        %v1381 = vand.u32 2147483647, %v1365
        %v1382 = vand.u32 2147483647, %v1366
        %v1383 = vand.u32 2147483647, %v1367
        %v1384 = vadd.f32 %v1368, %v1369
        %v1385 = vadd.f32 %v1384, %v1370
        %v1386 = vadd.f32 %v1385, %v1371
        %v1387 = vadd.f32 %v1386, %v1372
        %v1388 = vadd.f32 %v1387, %v1373
        %v1389 = vadd.f32 %v1388, %v1374
        %v1390 = vadd.f32 %v1389, %v1375
        %v1391 = vadd.f32 %v1390, %v1376
        %v1392 = vadd.f32 %v1391, %v1377
        %v1393 = vadd.f32 %v1392, %v1378
        %v1394 = vadd.f32 %v1393, %v1379
        %v1395 = vadd.f32 %v1394, %v1380
        %v1396 = vadd.f32 %v1395, %v1381
        %v1397 = vadd.f32 %v1396, %v1382
        %v1398 = vadd.f32 %v1397, %v1383
        %v1399 = vrot.slane %v1398, 4
        %v1400 = vadd.f32 %v1398, %v1399
        %v1401 = vrot.slane %v1400, 2
        %v1402 = vadd.f32 %v1400, %v1401
        %v1403 = vrot.slane %v1402, 1
        %v1404 = vadd.f32 %v1402, %v1403
        %v1405 = vmax.f32 %v1290, %v288
        %v1406 = vmax.f32 %v1294, %v289
        %v1407 = vmax.f32 %v1298, %v290
        %v1408 = vmax.f32 %v1302, %v291
        %v1409 = vmax.f32 %v1306, %v292
        %v1410 = vmax.f32 %v1310, %v293
        %v1411 = vmax.f32 %v1314, %v294
        %v1412 = vmax.f32 %v1318, %v295
        %v1413 = vmax.f32 %v1322, %v296
        %v1414 = vmax.f32 %v1326, %v297
        %v1415 = vmax.f32 %v1330, %v298
        %v1416 = vmax.f32 %v1334, %v299
        %v1417 = vmax.f32 %v1338, %v300
        %v1418 = vmax.f32 %v1342, %v301
        %v1419 = vmax.f32 %v1346, %v302
        %v1420 = vmax.f32 %v1350, %v303
        %v1421 = vadd.f32 %v1405, %v1406
        %v1422 = vadd.f32 %v1421, %v1407
        %v1423 = vadd.f32 %v1422, %v1408
        %v1424 = vadd.f32 %v1423, %v1409
        %v1425 = vadd.f32 %v1424, %v1410
        %v1426 = vadd.f32 %v1425, %v1411
        %v1427 = vadd.f32 %v1426, %v1412
        %v1428 = vadd.f32 %v1427, %v1413
        %v1429 = vadd.f32 %v1428, %v1414
        %v1430 = vadd.f32 %v1429, %v1415
        %v1431 = vadd.f32 %v1430, %v1416
        %v1432 = vadd.f32 %v1431, %v1417
        %v1433 = vadd.f32 %v1432, %v1418
        %v1434 = vadd.f32 %v1433, %v1419
        %v1435 = vadd.f32 %v1434, %v1420
        %v1436 = vrot.slane %v1435, 4
        %v1437 = vadd.f32 %v1435, %v1436
        %v1438 = vrot.slane %v1437, 2
        %v1439 = vadd.f32 %v1437, %v1438
        %v1440 = vrot.slane %v1439, 1
        %v1441 = vadd.f32 %v1439, %v1440
        %1442 = vset.pattern.permute.xlu0 5
        %1443 = vperm.xlu0 %1442, %v256
        %v1444 = vpop.permute.xlu0 %1443
        %1446 = vset.pattern.permute.xlu0 5
        %1447 = vperm.xlu0 %1446, %v257
        %v1448 = vpop.permute.xlu0 %1447
        %1450 = vset.pattern.permute.xlu0 5
        %1451 = vperm.xlu0 %1450, %v258
        %v1452 = vpop.permute.xlu0 %1451
        %1454 = vset.pattern.permute.xlu0 5
        %1455 = vperm.xlu0 %1454, %v259
        %v1456 = vpop.permute.xlu0 %1455
        %1458 = vset.pattern.permute.xlu0 5
        %1459 = vperm.xlu0 %1458, %v260
        %v1460 = vpop.permute.xlu0 %1459
        %1462 = vset.pattern.permute.xlu0 5
        %1463 = vperm.xlu0 %1462, %v261
        %v1464 = vpop.permute.xlu0 %1463
        %1466 = vset.pattern.permute.xlu0 5
        %1467 = vperm.xlu0 %1466, %v262
        %v1468 = vpop.permute.xlu0 %1467
        %1470 = vset.pattern.permute.xlu0 5
        %1471 = vperm.xlu0 %1470, %v263
        %v1472 = vpop.permute.xlu0 %1471
        %1474 = vset.pattern.permute.xlu0 5
        %1475 = vperm.xlu0 %1474, %v264
        %v1476 = vpop.permute.xlu0 %1475
        %1478 = vset.pattern.permute.xlu0 5
        %1479 = vperm.xlu0 %1478, %v265
        %v1480 = vpop.permute.xlu0 %1479
        %1482 = vset.pattern.permute.xlu0 5
        %1483 = vperm.xlu0 %1482, %v266
        %v1484 = vpop.permute.xlu0 %1483
        %1486 = vset.pattern.permute.xlu0 5
        %1487 = vperm.xlu0 %1486, %v267
        %v1488 = vpop.permute.xlu0 %1487
        %1490 = vset.pattern.permute.xlu0 5
        %1491 = vperm.xlu0 %1490, %v268
        %v1492 = vpop.permute.xlu0 %1491
        %1494 = vset.pattern.permute.xlu0 5
        %1495 = vperm.xlu0 %1494, %v269
        %v1496 = vpop.permute.xlu0 %1495
        %1498 = vset.pattern.permute.xlu0 5
        %1499 = vperm.xlu0 %1498, %v270
        %v1500 = vpop.permute.xlu0 %1499
        %1502 = vset.pattern.permute.xlu0 5
        %1503 = vperm.xlu0 %1502, %v271
        %v1504 = vpop.permute.xlu0 %1503
        %1506 = vset.pattern.permute.xlu0 5
        %1507 = vperm.xlu0 %1506, %v384
        %v1508 = vpop.permute.xlu0 %1507
        %1510 = vset.pattern.permute.xlu0 5
        %1511 = vperm.xlu0 %1510, %v385
        %v1512 = vpop.permute.xlu0 %1511
        %1514 = vset.pattern.permute.xlu0 5
        %1515 = vperm.xlu0 %1514, %v386
        %v1516 = vpop.permute.xlu0 %1515
        %1518 = vset.pattern.permute.xlu0 5
        %1519 = vperm.xlu0 %1518, %v387
        %v1520 = vpop.permute.xlu0 %1519
        %1522 = vset.pattern.permute.xlu0 5
        %1523 = vperm.xlu0 %1522, %v388
        %v1524 = vpop.permute.xlu0 %1523
        %1526 = vset.pattern.permute.xlu0 5
        %1527 = vperm.xlu0 %1526, %v389
        %v1528 = vpop.permute.xlu0 %1527
        %1530 = vset.pattern.permute.xlu0 5
        %1531 = vperm.xlu0 %1530, %v390
        %v1532 = vpop.permute.xlu0 %1531
        %1534 = vset.pattern.permute.xlu0 5
        %1535 = vperm.xlu0 %1534, %v391
        %v1536 = vpop.permute.xlu0 %1535
        %1538 = vset.pattern.permute.xlu0 5
        %1539 = vperm.xlu0 %1538, %v392
        %v1540 = vpop.permute.xlu0 %1539
        %1542 = vset.pattern.permute.xlu0 5
        %1543 = vperm.xlu0 %1542, %v393
        %v1544 = vpop.permute.xlu0 %1543
        %1546 = vset.pattern.permute.xlu0 5
        %1547 = vperm.xlu0 %1546, %v394
        %v1548 = vpop.permute.xlu0 %1547
        %1550 = vset.pattern.permute.xlu0 5
        %1551 = vperm.xlu0 %1550, %v395
        %v1552 = vpop.permute.xlu0 %1551
        %1554 = vset.pattern.permute.xlu0 5
        %1555 = vperm.xlu0 %1554, %v396
        %v1556 = vpop.permute.xlu0 %1555
        %1558 = vset.pattern.permute.xlu0 5
        %1559 = vperm.xlu0 %1558, %v397
        %v1560 = vpop.permute.xlu0 %1559
        %1562 = vset.pattern.permute.xlu0 5
        %1563 = vperm.xlu0 %1562, %v398
        %v1564 = vpop.permute.xlu0 %1563
        %1566 = vset.pattern.permute.xlu0 5
        %1567 = vperm.xlu0 %1566, %v399
        %v1568 = vpop.permute.xlu0 %1567
        %v1570 = vsub.f32 %v1444, %v272
        %v1571 = vsub.f32 %v1448, %v273
        %v1572 = vsub.f32 %v1452, %v274
        %v1573 = vsub.f32 %v1456, %v275
        %v1574 = vsub.f32 %v1460, %v276
        %v1575 = vsub.f32 %v1464, %v277
        %v1576 = vsub.f32 %v1468, %v278
        %v1577 = vsub.f32 %v1472, %v279
        %v1578 = vsub.f32 %v1476, %v280
        %v1579 = vsub.f32 %v1480, %v281
        %v1580 = vsub.f32 %v1484, %v282
        %v1581 = vsub.f32 %v1488, %v283
        %v1582 = vsub.f32 %v1492, %v284
        %v1583 = vsub.f32 %v1496, %v285
        %v1584 = vsub.f32 %v1500, %v286
        %v1585 = vsub.f32 %v1504, %v287
        %v1586 = vand.u32 2147483647, %v1570
        %v1587 = vand.u32 2147483647, %v1571
        %v1588 = vand.u32 2147483647, %v1572
        %v1589 = vand.u32 2147483647, %v1573
        %v1590 = vand.u32 2147483647, %v1574
        %v1591 = vand.u32 2147483647, %v1575
        %v1592 = vand.u32 2147483647, %v1576
        %v1593 = vand.u32 2147483647, %v1577
        %v1594 = vand.u32 2147483647, %v1578
        %v1595 = vand.u32 2147483647, %v1579
        %v1596 = vand.u32 2147483647, %v1580
        %v1597 = vand.u32 2147483647, %v1581
        %v1598 = vand.u32 2147483647, %v1582
        %v1599 = vand.u32 2147483647, %v1583
        %v1600 = vand.u32 2147483647, %v1584
        %v1601 = vand.u32 2147483647, %v1585
        %v1602 = vadd.f32 %v1586, %v1587
        %v1603 = vadd.f32 %v1602, %v1588
        %v1604 = vadd.f32 %v1603, %v1589
        %v1605 = vadd.f32 %v1604, %v1590
        %v1606 = vadd.f32 %v1605, %v1591
        %v1607 = vadd.f32 %v1606, %v1592
        %v1608 = vadd.f32 %v1607, %v1593
        %v1609 = vadd.f32 %v1608, %v1594
        %v1610 = vadd.f32 %v1609, %v1595
        %v1611 = vadd.f32 %v1610, %v1596
        %v1612 = vadd.f32 %v1611, %v1597
        %v1613 = vadd.f32 %v1612, %v1598
        %v1614 = vadd.f32 %v1613, %v1599
        %v1615 = vadd.f32 %v1614, %v1600
        %v1616 = vadd.f32 %v1615, %v1601
        %v1617 = vrot.slane %v1616, 4
        %v1618 = vadd.f32 %v1616, %v1617
        %v1619 = vrot.slane %v1618, 2
        %v1620 = vadd.f32 %v1618, %v1619
        %v1621 = vrot.slane %v1620, 1
        %v1622 = vadd.f32 %v1620, %v1621
        %v1623 = vmax.f32 %v1508, %v288
        %v1624 = vmax.f32 %v1512, %v289
        %v1625 = vmax.f32 %v1516, %v290
        %v1626 = vmax.f32 %v1520, %v291
        %v1627 = vmax.f32 %v1524, %v292
        %v1628 = vmax.f32 %v1528, %v293
        %v1629 = vmax.f32 %v1532, %v294
        %v1630 = vmax.f32 %v1536, %v295
        %v1631 = vmax.f32 %v1540, %v296
        %v1632 = vmax.f32 %v1544, %v297
        %v1633 = vmax.f32 %v1548, %v298
        %v1634 = vmax.f32 %v1552, %v299
        %v1635 = vmax.f32 %v1556, %v300
        %v1636 = vmax.f32 %v1560, %v301
        %v1637 = vmax.f32 %v1564, %v302
        %v1638 = vmax.f32 %v1568, %v303
        %v1639 = vadd.f32 %v1623, %v1624
        %v1640 = vadd.f32 %v1639, %v1625
        %v1641 = vadd.f32 %v1640, %v1626
        %v1642 = vadd.f32 %v1641, %v1627
        %v1643 = vadd.f32 %v1642, %v1628
        %v1644 = vadd.f32 %v1643, %v1629
        %v1645 = vadd.f32 %v1644, %v1630
        %v1646 = vadd.f32 %v1645, %v1631
        %v1647 = vadd.f32 %v1646, %v1632
        %v1648 = vadd.f32 %v1647, %v1633
        %v1649 = vadd.f32 %v1648, %v1634
        %v1650 = vadd.f32 %v1649, %v1635
        %v1651 = vadd.f32 %v1650, %v1636
        %v1652 = vadd.f32 %v1651, %v1637
        %v1653 = vadd.f32 %v1652, %v1638
        %v1654 = vrot.slane %v1653, 4
        %v1655 = vadd.f32 %v1653, %v1654
        %v1656 = vrot.slane %v1655, 2
        %v1657 = vadd.f32 %v1655, %v1656
        %v1658 = vrot.slane %v1657, 1
        %v1659 = vadd.f32 %v1657, %v1658
        %1660 = vset.pattern.permute.xlu0 6
        %1661 = vperm.xlu0 %1660, %v256
        %v1662 = vpop.permute.xlu0 %1661
        %1664 = vset.pattern.permute.xlu0 6
        %1665 = vperm.xlu0 %1664, %v257
        %v1666 = vpop.permute.xlu0 %1665
        %1668 = vset.pattern.permute.xlu0 6
        %1669 = vperm.xlu0 %1668, %v258
        %v1670 = vpop.permute.xlu0 %1669
        %1672 = vset.pattern.permute.xlu0 6
        %1673 = vperm.xlu0 %1672, %v259
        %v1674 = vpop.permute.xlu0 %1673
        %1676 = vset.pattern.permute.xlu0 6
        %1677 = vperm.xlu0 %1676, %v260
        %v1678 = vpop.permute.xlu0 %1677
        %1680 = vset.pattern.permute.xlu0 6
        %1681 = vperm.xlu0 %1680, %v261
        %v1682 = vpop.permute.xlu0 %1681
        %1684 = vset.pattern.permute.xlu0 6
        %1685 = vperm.xlu0 %1684, %v262
        %v1686 = vpop.permute.xlu0 %1685
        %1688 = vset.pattern.permute.xlu0 6
        %1689 = vperm.xlu0 %1688, %v263
        %v1690 = vpop.permute.xlu0 %1689
        %1692 = vset.pattern.permute.xlu0 6
        %1693 = vperm.xlu0 %1692, %v264
        %v1694 = vpop.permute.xlu0 %1693
        %1696 = vset.pattern.permute.xlu0 6
        %1697 = vperm.xlu0 %1696, %v265
        %v1698 = vpop.permute.xlu0 %1697
        %1700 = vset.pattern.permute.xlu0 6
        %1701 = vperm.xlu0 %1700, %v266
        %v1702 = vpop.permute.xlu0 %1701
        %1704 = vset.pattern.permute.xlu0 6
        %1705 = vperm.xlu0 %1704, %v267
        %v1706 = vpop.permute.xlu0 %1705
        %1708 = vset.pattern.permute.xlu0 6
        %1709 = vperm.xlu0 %1708, %v268
        %v1710 = vpop.permute.xlu0 %1709
        %1712 = vset.pattern.permute.xlu0 6
        %1713 = vperm.xlu0 %1712, %v269
        %v1714 = vpop.permute.xlu0 %1713
        %1716 = vset.pattern.permute.xlu0 6
        %1717 = vperm.xlu0 %1716, %v270
        %v1718 = vpop.permute.xlu0 %1717
        %1720 = vset.pattern.permute.xlu0 6
        %1721 = vperm.xlu0 %1720, %v271
        %v1722 = vpop.permute.xlu0 %1721
        %1724 = vset.pattern.permute.xlu0 6
        %1725 = vperm.xlu0 %1724, %v384
        %v1726 = vpop.permute.xlu0 %1725
        %1728 = vset.pattern.permute.xlu0 6
        %1729 = vperm.xlu0 %1728, %v385
        %v1730 = vpop.permute.xlu0 %1729
        %1732 = vset.pattern.permute.xlu0 6
        %1733 = vperm.xlu0 %1732, %v386
        %v1734 = vpop.permute.xlu0 %1733
        %1736 = vset.pattern.permute.xlu0 6
        %1737 = vperm.xlu0 %1736, %v387
        %v1738 = vpop.permute.xlu0 %1737
        %1740 = vset.pattern.permute.xlu0 6
        %1741 = vperm.xlu0 %1740, %v388
        %v1742 = vpop.permute.xlu0 %1741
        %1744 = vset.pattern.permute.xlu0 6
        %1745 = vperm.xlu0 %1744, %v389
        %v1746 = vpop.permute.xlu0 %1745
        %1748 = vset.pattern.permute.xlu0 6
        %1749 = vperm.xlu0 %1748, %v390
        %v1750 = vpop.permute.xlu0 %1749
        %1752 = vset.pattern.permute.xlu0 6
        %1753 = vperm.xlu0 %1752, %v391
        %v1754 = vpop.permute.xlu0 %1753
        %1756 = vset.pattern.permute.xlu0 6
        %1757 = vperm.xlu0 %1756, %v392
        %v1758 = vpop.permute.xlu0 %1757
        %1760 = vset.pattern.permute.xlu0 6
        %1761 = vperm.xlu0 %1760, %v393
        %v1762 = vpop.permute.xlu0 %1761
        %1764 = vset.pattern.permute.xlu0 6
        %1765 = vperm.xlu0 %1764, %v394
        %v1766 = vpop.permute.xlu0 %1765
        %1768 = vset.pattern.permute.xlu0 6
        %1769 = vperm.xlu0 %1768, %v395
        %v1770 = vpop.permute.xlu0 %1769
        %1772 = vset.pattern.permute.xlu0 6
        %1773 = vperm.xlu0 %1772, %v396
        %v1774 = vpop.permute.xlu0 %1773
        %1776 = vset.pattern.permute.xlu0 6
        %1777 = vperm.xlu0 %1776, %v397
        %v1778 = vpop.permute.xlu0 %1777
        %1780 = vset.pattern.permute.xlu0 6
        %1781 = vperm.xlu0 %1780, %v398
        %v1782 = vpop.permute.xlu0 %1781
        %1784 = vset.pattern.permute.xlu0 6
        %1785 = vperm.xlu0 %1784, %v399
        %v1786 = vpop.permute.xlu0 %1785
        %v1788 = vsub.f32 %v1662, %v272
        %v1789 = vsub.f32 %v1666, %v273
        %v1790 = vsub.f32 %v1670, %v274
        %v1791 = vsub.f32 %v1674, %v275
        %v1792 = vsub.f32 %v1678, %v276
        %v1793 = vsub.f32 %v1682, %v277
        %v1794 = vsub.f32 %v1686, %v278
        %v1795 = vsub.f32 %v1690, %v279
        %v1796 = vsub.f32 %v1694, %v280
        %v1797 = vsub.f32 %v1698, %v281
        %v1798 = vsub.f32 %v1702, %v282
        %v1799 = vsub.f32 %v1706, %v283
        %v1800 = vsub.f32 %v1710, %v284
        %v1801 = vsub.f32 %v1714, %v285
        %v1802 = vsub.f32 %v1718, %v286
        %v1803 = vsub.f32 %v1722, %v287
        %v1804 = vand.u32 2147483647, %v1788
        %v1805 = vand.u32 2147483647, %v1789
        %v1806 = vand.u32 2147483647, %v1790
        %v1807 = vand.u32 2147483647, %v1791
        %v1808 = vand.u32 2147483647, %v1792
        %v1809 = vand.u32 2147483647, %v1793
        %v1810 = vand.u32 2147483647, %v1794
        %v1811 = vand.u32 2147483647, %v1795
        %v1812 = vand.u32 2147483647, %v1796
        %v1813 = vand.u32 2147483647, %v1797
        %v1814 = vand.u32 2147483647, %v1798
        %v1815 = vand.u32 2147483647, %v1799
        %v1816 = vand.u32 2147483647, %v1800
        %v1817 = vand.u32 2147483647, %v1801
        %v1818 = vand.u32 2147483647, %v1802
        %v1819 = vand.u32 2147483647, %v1803
        %v1820 = vadd.f32 %v1804, %v1805
        %v1821 = vadd.f32 %v1820, %v1806
        %v1822 = vadd.f32 %v1821, %v1807
        %v1823 = vadd.f32 %v1822, %v1808
        %v1824 = vadd.f32 %v1823, %v1809
        %v1825 = vadd.f32 %v1824, %v1810
        %v1826 = vadd.f32 %v1825, %v1811
        %v1827 = vadd.f32 %v1826, %v1812
        %v1828 = vadd.f32 %v1827, %v1813
        %v1829 = vadd.f32 %v1828, %v1814
        %v1830 = vadd.f32 %v1829, %v1815
        %v1831 = vadd.f32 %v1830, %v1816
        %v1832 = vadd.f32 %v1831, %v1817
        %v1833 = vadd.f32 %v1832, %v1818
        %v1834 = vadd.f32 %v1833, %v1819
        %v1835 = vrot.slane %v1834, 4
        %v1836 = vadd.f32 %v1834, %v1835
        %v1837 = vrot.slane %v1836, 2
        %v1838 = vadd.f32 %v1836, %v1837
        %v1839 = vrot.slane %v1838, 1
        %v1840 = vadd.f32 %v1838, %v1839
        %v1841 = vmax.f32 %v1726, %v288
        %v1842 = vmax.f32 %v1730, %v289
        %v1843 = vmax.f32 %v1734, %v290
        %v1844 = vmax.f32 %v1738, %v291
        %v1845 = vmax.f32 %v1742, %v292
        %v1846 = vmax.f32 %v1746, %v293
        %v1847 = vmax.f32 %v1750, %v294
        %v1848 = vmax.f32 %v1754, %v295
        %v1849 = vmax.f32 %v1758, %v296
        %v1850 = vmax.f32 %v1762, %v297
        %v1851 = vmax.f32 %v1766, %v298
        %v1852 = vmax.f32 %v1770, %v299
        %v1853 = vmax.f32 %v1774, %v300
        %v1854 = vmax.f32 %v1778, %v301
        %v1855 = vmax.f32 %v1782, %v302
        %v1856 = vmax.f32 %v1786, %v303
        %v1857 = vadd.f32 %v1841, %v1842
        %v1858 = vadd.f32 %v1857, %v1843
        %v1859 = vadd.f32 %v1858, %v1844
        %v1860 = vadd.f32 %v1859, %v1845
        %v1861 = vadd.f32 %v1860, %v1846
        %v1862 = vadd.f32 %v1861, %v1847
        %v1863 = vadd.f32 %v1862, %v1848
        %v1864 = vadd.f32 %v1863, %v1849
        %v1865 = vadd.f32 %v1864, %v1850
        %v1866 = vadd.f32 %v1865, %v1851
        %v1867 = vadd.f32 %v1866, %v1852
        %v1868 = vadd.f32 %v1867, %v1853
        %v1869 = vadd.f32 %v1868, %v1854
        %v1870 = vadd.f32 %v1869, %v1855
        %v1871 = vadd.f32 %v1870, %v1856
        %v1872 = vrot.slane %v1871, 4
        %v1873 = vadd.f32 %v1871, %v1872
        %v1874 = vrot.slane %v1873, 2
        %v1875 = vadd.f32 %v1873, %v1874
        %v1876 = vrot.slane %v1875, 1
        %v1877 = vadd.f32 %v1875, %v1876
        %1878 = vset.pattern.permute.xlu0 7
        %1879 = vperm.xlu0 %1878, %v256
        %v1880 = vpop.permute.xlu0 %1879
        %1882 = vset.pattern.permute.xlu0 7
        %1883 = vperm.xlu0 %1882, %v257
        %v1884 = vpop.permute.xlu0 %1883
        %1886 = vset.pattern.permute.xlu0 7
        %1887 = vperm.xlu0 %1886, %v258
        %v1888 = vpop.permute.xlu0 %1887
        %1890 = vset.pattern.permute.xlu0 7
        %1891 = vperm.xlu0 %1890, %v259
        %v1892 = vpop.permute.xlu0 %1891
        %1894 = vset.pattern.permute.xlu0 7
        %1895 = vperm.xlu0 %1894, %v260
        %v1896 = vpop.permute.xlu0 %1895
        %1898 = vset.pattern.permute.xlu0 7
        %1899 = vperm.xlu0 %1898, %v261
        %v1900 = vpop.permute.xlu0 %1899
        %1902 = vset.pattern.permute.xlu0 7
        %1903 = vperm.xlu0 %1902, %v262
        %v1904 = vpop.permute.xlu0 %1903
        %1906 = vset.pattern.permute.xlu0 7
        %1907 = vperm.xlu0 %1906, %v263
        %v1908 = vpop.permute.xlu0 %1907
        %1910 = vset.pattern.permute.xlu0 7
        %1911 = vperm.xlu0 %1910, %v264
        %v1912 = vpop.permute.xlu0 %1911
        %1914 = vset.pattern.permute.xlu0 7
        %1915 = vperm.xlu0 %1914, %v265
        %v1916 = vpop.permute.xlu0 %1915
        %1918 = vset.pattern.permute.xlu0 7
        %1919 = vperm.xlu0 %1918, %v266
        %v1920 = vpop.permute.xlu0 %1919
        %1922 = vset.pattern.permute.xlu0 7
        %1923 = vperm.xlu0 %1922, %v267
        %v1924 = vpop.permute.xlu0 %1923
        %1926 = vset.pattern.permute.xlu0 7
        %1927 = vperm.xlu0 %1926, %v268
        %v1928 = vpop.permute.xlu0 %1927
        %1930 = vset.pattern.permute.xlu0 7
        %1931 = vperm.xlu0 %1930, %v269
        %v1932 = vpop.permute.xlu0 %1931
        %1934 = vset.pattern.permute.xlu0 7
        %1935 = vperm.xlu0 %1934, %v270
        %v1936 = vpop.permute.xlu0 %1935
        %1938 = vset.pattern.permute.xlu0 7
        %1939 = vperm.xlu0 %1938, %v271
        %v1940 = vpop.permute.xlu0 %1939
        %1942 = vset.pattern.permute.xlu0 7
        %1943 = vperm.xlu0 %1942, %v384
        %v1944 = vpop.permute.xlu0 %1943
        %1946 = vset.pattern.permute.xlu0 7
        %1947 = vperm.xlu0 %1946, %v385
        %v1948 = vpop.permute.xlu0 %1947
        %1950 = vset.pattern.permute.xlu0 7
        %1951 = vperm.xlu0 %1950, %v386
        %v1952 = vpop.permute.xlu0 %1951
        %1954 = vset.pattern.permute.xlu0 7
        %1955 = vperm.xlu0 %1954, %v387
        %v1956 = vpop.permute.xlu0 %1955
        %1958 = vset.pattern.permute.xlu0 7
        %1959 = vperm.xlu0 %1958, %v388
        %v1960 = vpop.permute.xlu0 %1959
        %1962 = vset.pattern.permute.xlu0 7
        %1963 = vperm.xlu0 %1962, %v389
        %v1964 = vpop.permute.xlu0 %1963
        %1966 = vset.pattern.permute.xlu0 7
        %1967 = vperm.xlu0 %1966, %v390
        %v1968 = vpop.permute.xlu0 %1967
        %1970 = vset.pattern.permute.xlu0 7
        %1971 = vperm.xlu0 %1970, %v391
        %v1972 = vpop.permute.xlu0 %1971
        %1974 = vset.pattern.permute.xlu0 7
        %1975 = vperm.xlu0 %1974, %v392
        %v1976 = vpop.permute.xlu0 %1975
        %1978 = vset.pattern.permute.xlu0 7
        %1979 = vperm.xlu0 %1978, %v393
        %v1980 = vpop.permute.xlu0 %1979
        %1982 = vset.pattern.permute.xlu0 7
        %1983 = vperm.xlu0 %1982, %v394
        %v1984 = vpop.permute.xlu0 %1983
        %1986 = vset.pattern.permute.xlu0 7
        %1987 = vperm.xlu0 %1986, %v395
        %v1988 = vpop.permute.xlu0 %1987
        %1990 = vset.pattern.permute.xlu0 7
        %1991 = vperm.xlu0 %1990, %v396
        %v1992 = vpop.permute.xlu0 %1991
        %1994 = vset.pattern.permute.xlu0 7
        %1995 = vperm.xlu0 %1994, %v397
        %v1996 = vpop.permute.xlu0 %1995
        %1998 = vset.pattern.permute.xlu0 7
        %1999 = vperm.xlu0 %1998, %v398
        %v2000 = vpop.permute.xlu0 %1999
        %2002 = vset.pattern.permute.xlu0 7
        %2003 = vperm.xlu0 %2002, %v399
        %v2004 = vpop.permute.xlu0 %2003
        %v2006 = vsub.f32 %v1880, %v272
        %v2007 = vsub.f32 %v1884, %v273
        %v2008 = vsub.f32 %v1888, %v274
        %v2009 = vsub.f32 %v1892, %v275
        %v2010 = vsub.f32 %v1896, %v276
        %v2011 = vsub.f32 %v1900, %v277
        %v2012 = vsub.f32 %v1904, %v278
        %v2013 = vsub.f32 %v1908, %v279
        %v2014 = vsub.f32 %v1912, %v280
        %v2015 = vsub.f32 %v1916, %v281
        %v2016 = vsub.f32 %v1920, %v282
        %v2017 = vsub.f32 %v1924, %v283
        %v2018 = vsub.f32 %v1928, %v284
        %v2019 = vsub.f32 %v1932, %v285
        %v2020 = vsub.f32 %v1936, %v286
        %v2021 = vsub.f32 %v1940, %v287
        %v2022 = vand.u32 2147483647, %v2006
        %v2023 = vand.u32 2147483647, %v2007
        %v2024 = vand.u32 2147483647, %v2008
        %v2025 = vand.u32 2147483647, %v2009
        %v2026 = vand.u32 2147483647, %v2010
        %v2027 = vand.u32 2147483647, %v2011
        %v2028 = vand.u32 2147483647, %v2012
        %v2029 = vand.u32 2147483647, %v2013
        %v2030 = vand.u32 2147483647, %v2014
        %v2031 = vand.u32 2147483647, %v2015
        %v2032 = vand.u32 2147483647, %v2016
        %v2033 = vand.u32 2147483647, %v2017
        %v2034 = vand.u32 2147483647, %v2018
        %v2035 = vand.u32 2147483647, %v2019
        %v2036 = vand.u32 2147483647, %v2020
        %v2037 = vand.u32 2147483647, %v2021
        %v2038 = vadd.f32 %v2022, %v2023
        %v2039 = vadd.f32 %v2038, %v2024
        %v2040 = vadd.f32 %v2039, %v2025
        %v2041 = vadd.f32 %v2040, %v2026
        %v2042 = vadd.f32 %v2041, %v2027
        %v2043 = vadd.f32 %v2042, %v2028
        %v2044 = vadd.f32 %v2043, %v2029
        %v2045 = vadd.f32 %v2044, %v2030
        %v2046 = vadd.f32 %v2045, %v2031
        %v2047 = vadd.f32 %v2046, %v2032
        %v2048 = vadd.f32 %v2047, %v2033
        %v2049 = vadd.f32 %v2048, %v2034
        %v2050 = vadd.f32 %v2049, %v2035
        %v2051 = vadd.f32 %v2050, %v2036
        %v2052 = vadd.f32 %v2051, %v2037
        %v2053 = vrot.slane %v2052, 4
        %v2054 = vadd.f32 %v2052, %v2053
        %v2055 = vrot.slane %v2054, 2
        %v2056 = vadd.f32 %v2054, %v2055
        %v2057 = vrot.slane %v2056, 1
        %v2058 = vadd.f32 %v2056, %v2057
        %v2059 = vmax.f32 %v1944, %v288
        %v2060 = vmax.f32 %v1948, %v289
        %v2061 = vmax.f32 %v1952, %v290
        %v2062 = vmax.f32 %v1956, %v291
        %v2063 = vmax.f32 %v1960, %v292
        %v2064 = vmax.f32 %v1964, %v293
        %v2065 = vmax.f32 %v1968, %v294
        %v2066 = vmax.f32 %v1972, %v295
        %v2067 = vmax.f32 %v1976, %v296
        %v2068 = vmax.f32 %v1980, %v297
        %v2069 = vmax.f32 %v1984, %v298
        %v2070 = vmax.f32 %v1988, %v299
        %v2071 = vmax.f32 %v1992, %v300
        %v2072 = vmax.f32 %v1996, %v301
        %v2073 = vmax.f32 %v2000, %v302
        %v2074 = vmax.f32 %v2004, %v303
        %v2075 = vadd.f32 %v2059, %v2060
        %v2076 = vadd.f32 %v2075, %v2061
        %v2077 = vadd.f32 %v2076, %v2062
        %v2078 = vadd.f32 %v2077, %v2063
        %v2079 = vadd.f32 %v2078, %v2064
        %v2080 = vadd.f32 %v2079, %v2065
        %v2081 = vadd.f32 %v2080, %v2066
        %v2082 = vadd.f32 %v2081, %v2067
        %v2083 = vadd.f32 %v2082, %v2068
        %v2084 = vadd.f32 %v2083, %v2069
        %v2085 = vadd.f32 %v2084, %v2070
        %v2086 = vadd.f32 %v2085, %v2071
        %v2087 = vadd.f32 %v2086, %v2072
        %v2088 = vadd.f32 %v2087, %v2073
        %v2089 = vadd.f32 %v2088, %v2074
        %v2090 = vrot.slane %v2089, 4
        %v2091 = vadd.f32 %v2089, %v2090
        %v2092 = vrot.slane %v2091, 2
        %v2093 = vadd.f32 %v2091, %v2092
        %v2094 = vrot.slane %v2093, 1
        %v2095 = vadd.f32 %v2093, %v2094
        %v2096 = vld [vmem:[#allocation2] sm:$0xff]
        %vm2097 = vcmask 1040384
        %v2098 = vsel %vm2097, %v532, %v750
        %vm2099 = vcmask 1041408
        %v2100 = vsel %vm2099, %v2098, %v968
        %vm2101 = vcmask 1042432
        %v2102 = vsel %vm2101, %v2100, %v1186
        %vm2103 = vcmask 1043456
        %v2104 = vsel %vm2103, %v2102, %v1404
        %vm2105 = vcmask 1044480
        %v2106 = vsel %vm2105, %v2104, %v1622
        %vm2107 = vcmask 1045504
        %v2108 = vsel %vm2107, %v2106, %v1840
        %vm2109 = vcmask 1046528
        %v2110 = vsel %vm2109, %v2108, %v2058
        %v2111 = vadd.f32 %v2096, %v2110
        %2112 = vst [vmem:[#allocation2] sm:$0xff] %v2111
        %v2113 = vld [vmem:[#allocation3] sm:$0xff]
        %v2114 = vsel %vm2097, %v569, %v787
        %v2115 = vsel %vm2099, %v2114, %v1005
        %v2116 = vsel %vm2101, %v2115, %v1223
        %v2117 = vsel %vm2103, %v2116, %v1441
        %v2118 = vsel %vm2105, %v2117, %v1659
        %v2119 = vsel %vm2107, %v2118, %v1877
        %v2120 = vsel %vm2109, %v2119, %v2095
        %v2121 = vadd.f32 %v2113, %v2120
        %2122 = vst [vmem:[#allocation3] sm:$0xff] %v2121
        %p2123 = scmp.eq.s32.totalorder %s29, 2
        // Predicated region
        $region41: #{tpu_custom_call.1} parent=27 // pred_check
          %p2124 = pneg %p2123
        $region42: #{tpu_custom_call.1} parent=27 // pred_check_branch
          %2126 = sbr.rel (%p2124) target = $region44
        $region43: #{tpu_custom_call.1} parent=27 // pred_region
          %v2127 = vld [vmem:[#allocation2] sm:$0xff]
          %v2128 = vld [vmem:[#allocation3] sm:$0xff]
          %v2129 = vmul.f32 %v2128, 2.0
          %v2130 = vsub.f32 %v2129, %v2127
          %v2131 = vmax.f32 %v2130, 0.0
          %v2132 = vadd.f32 %v2131, 1e-08
          %v2133 = vrcp.pop %v2132
          %v2134 = vmul.f32 %v2132, %v2133
          %v2135 = vsub.f32 1.0, %v2134
          %v2136 = vmul.f32 %v2133, %v2135
          %v2137 = vadd.f32 %v2133, %v2136
          %vm2138 = vweird.f32 %v2132
          %vm2139 = vweird.f32 %v2133
          %vm2140 = vmor %vm2138, %vm2139
          %v2141 = vsel %vm2140, %v2133, %v2137
          %v2142 = vand.u32 2147483647, %v2132
          %vm2143 = vcmp.eq.f32.partialorder %v2142, 8.507059e+37
          %v2144 = vand.u32 %v2132, 2147483648
          %v2145 = vor.u32 1.1754944e-38, %v2144
          %v2146 = vsel %vm2143, %v2145, %v2141
          %v2147 = vmul.f32 %v2127, %v2146
          %v2148 = vsub.f32 1.0, %v2147
          %2149 = vst [vmem:[%s231] sm:$0xff] %v2148
        $region44: #{tpu_custom_call.1} parent=27 // pred_fallthru
          _
        %s2150 = sand.u32 %s107, 1
        %s2151 = scalar_lea.sflag [#allocation6], %s2150
        %s2152 = sand.u32 %s107, 1
        %s2153 = smul.addr %s2152, 8
        %s2154 = scalar_lea.vmem [#allocation9], %s2153
        // Predicated region
        $region45: #{tpu_custom_call.1} parent=27 // pred_check
          %p2155 = pneg %p117
        $region46: #{tpu_custom_call.1} parent=27 // pred_check_branch
          %2157 = sbr.rel (%p2155) target = $region48
        $region47: #{tpu_custom_call.1} parent=27 // pred_region
          %2159 = vsyncadd %s2151, 0
          %s2160 = smul.addr %s27, 2
          %s2161 = sadd.s32 %s28, %s2160
          %s2162 = smul.addr %s2161, 8
          %s2163 = scalar_lea.hbm %s2, %s2162
          %s2165 = sshll.u32 %s2154, 4
          %s2166 = int_to_ptr.vmem [resolvable:$true] %s2165
          %s2167 = sshll.u32 %s2163, 4
          %s2168 = int_to_ptr.hbm [resolvable:$true] %s2167
          %2170 = dma.vmem_to_hbm [thread:$0]  %s2166, 128, %s2168, %s2151
        $region48: #{tpu_custom_call.1} parent=27 // pred_fallthru
          _
      $region28: #{tpu_custom_call.1} parent=5 // pred_fallthru
        _
      %p2171 = scmp.le.s32.totalorder 2, %s17
      // Predicated region
      $region49: #{tpu_custom_call.1} parent=5 // pred_check
        %p2172 = pneg %p2171
      $region50: #{tpu_custom_call.1} parent=5 // pred_check_branch
        %2174 = sbr.rel (%p2172) target = $region52
      $region51: #{tpu_custom_call.1} parent=5 // pred_region
        %s2175 = ssub.s32 %s17, 2
        // Predicated region
        $region53: #{tpu_custom_call.1} parent=51 // pred_check
          %p2176 = pneg %p123
        $region54: #{tpu_custom_call.1} parent=51 // pred_check_branch
          %2178 = sbr.rel (%p2176) target = $region56
        $region55: #{tpu_custom_call.1} parent=51 // pred_region
          %s2179 = sand.u32 %s108, 1
          %s2180 = scalar_lea.sflag [#allocation6], %s2179
          %s2181 = sand.u32 %s108, 1
          %s2182 = smul.addr %s2181, 8
          %s2183 = scalar_lea.vmem [#allocation9], %s2182
          %2185 = dma.done %s2180, 128
        $region56: #{tpu_custom_call.1} parent=51 // pred_fallthru
          _
      $region52: #{tpu_custom_call.1} parent=5 // pred_fallthru
        _
    $region6: #{tpu_custom_call.1} parent=1 // loop_footer
      %s21 = sadd.s32 1, %s17
    $region7: #{tpu_custom_call.1} parent=1 // loop_footer_branch
      %16 = sbr.rel target = $region3
    $region8: #{tpu_custom_call.1} parent=1 // loop_exit
      _
    %2186 = vsyncpa [#allocation5], 1
    %s2187 = scalar_lea.sflag [#allocation5], 1
    %2188 = vsyncpa %s2187, 1
    %2189 = vsyncpa [#allocation8], 1
    %s2190 = scalar_lea.sflag [#allocation8], 1
    %2191 = vsyncpa %s2190, 1
    %2192 = vsyncpa [#allocation6], 1
    %s2193 = scalar_lea.sflag [#allocation6], 1
    %2194 = vsyncpa %s2193, 1

</llo_original>
